<compile_context>
chip_gen: v7x
topology: tpu7x:2x2x1
jax: 0.10.0
libtpu: 0.0.40
codegen_flags: <defaults>
</compile_context>

<pallas_src>
import functools

import jax
import jax.numpy as jnp
from jax.experimental import pallas as pl
from jax.experimental.pallas import tpu as pltpu


def _round_up(n, m):
    return (n + m - 1) // m * m


def dqn_kernel(x_ref, w1_ref, w2_ref, w3_ref, wh1_ref, wh2_ref, bias_ref,
               q_ref, *, action_dim):
    f32 = jnp.float32
    bf16 = jnp.bfloat16

    H1 = w1_ref.shape[1]
    H2 = w2_ref.shape[1]
    H3 = w3_ref.shape[1]
    HH = wh1_ref.shape[1]

    o1 = 0
    o2 = o1 + H1
    o3 = o2 + H2
    o4 = o3 + H3
    o5 = o4 + HH

    def dot(a, w_ref):
        # bf16 x bf16 on the MXU with f32 accumulation.
        return jnp.dot(a.astype(bf16), w_ref[...], preferred_element_type=f32)

    x = x_ref[...]

    # Backbone. Dropout(0.3) is identity in eval/inference mode.
    # TODO(synk): training-mode dropout masking not implemented (inference semantics).
    h1 = jnp.maximum(dot(x, w1_ref) + bias_ref[:, o1:o2], 0.0)
    h2 = jnp.maximum(dot(h1, w2_ref) + bias_ref[:, o2:o3], 0.0)

    # shared_features: captured right after Linear(256, 128), BEFORE ReLU.
    shared = dot(h2, w3_ref) + bias_ref[:, o3:o4]

    # Fused heads, stage 1: [hv | ha] = relu(shared @ [Wv1 | Wa1] + [bv1 | ba1]).
    hh = jnp.maximum(dot(shared, wh1_ref) + bias_ref[:, o4:o5], 0.0)

    # Fused heads, stage 2: block-diagonal [[Wv2, 0], [0, Wa2]] padded to 128
    # lanes; col 0 -> value, cols 1..1+A -> advantage, remaining cols are 0.
    head2 = dot(hh, wh2_ref) + bias_ref[:, o5:]

    value = head2[:, 0:1]
    adv = head2[:, 1:1 + action_dim]
    adv_mean = jnp.mean(adv, axis=1, keepdims=True)

    # Lane-dense (bm, 128) store: cols 1..1+A carry q = value + (adv - mean_adv);
    # the wrapper slices them out. Other columns are don't-care.
    q_ref[...] = head2 + (value - adv_mean)


@functools.partial(jax.jit, static_argnames=("action_dim", "block_batch"))
def dqn_forward(x, params, action_dim, block_batch=128):
    B, S = x.shape
    bm = min(block_batch, _round_up(B, 8))
    B_pad = _round_up(B, bm)
    if B_pad != B:
        x = jnp.pad(x, ((0, B_pad - B), (0, 0)))

    out2 = params["wh2"].shape[1]
    weights = (params["w1"], params["w2"], params["w3"],
               params["wh1"], params["wh2"], params["biases"])

    out = pl.pallas_call(
        functools.partial(dqn_kernel, action_dim=action_dim),
        out_shape=jax.ShapeDtypeStruct((B_pad, out2), jnp.float32),
        grid=(B_pad // bm,),
        in_specs=[pl.BlockSpec((bm, S), lambda i: (i, 0))]
                 # weights/biases: constant block index -> DMA'd once, VMEM-resident
                 + [pl.BlockSpec(w.shape, lambda i: (0, 0)) for w in weights],
        out_specs=pl.BlockSpec((bm, out2), lambda i: (i, 0)),
        compiler_params=pltpu.CompilerParams(
            dimension_semantics=("parallel",)),
    )(x, *weights)

    # Slice padded batch rows and the q columns out of the lane-dense slab.
    return out[:B, 1:1 + action_dim]


def init_params(key, state_dim, action_dim, hidden_dims=(512, 256, 128)):
    """Deterministic synthetic f32 master parameters; weights are (in, out)."""
    keys = jax.random.split(key, 16)

    def lin(kw, kb, din, dout, scale):
        w = (jax.random.normal(kw, (din, dout), jnp.float32) * scale)
        b = (jax.random.normal(kb, (1, dout), jnp.float32) * 0.01)
        return w, b

    h1, h2, h3 = hidden_dims
    w1, b1 = lin(keys[0], keys[1], state_dim, h1, (2.0 / state_dim) ** 0.5)
    w2, b2 = lin(keys[2], keys[3], h1, h2, (2.0 / h1) ** 0.5)
    w3, b3 = lin(keys[4], keys[5], h2, h3, (2.0 / h2) ** 0.5)
    wv1, bv1 = lin(keys[6], keys[7], h3, 64, (2.0 / h3) ** 0.5)
    wv2, bv2 = lin(keys[8], keys[9], 64, 1, (2.0 / 64) ** 0.5)
    wa1, ba1 = lin(keys[10], keys[11], h3, 64, (2.0 / h3) ** 0.5)
    wa2, ba2 = lin(keys[12], keys[13], 64, action_dim, (2.0 / 64) ** 0.5)
    # Final Linear(h3, action_dim) of `network` exists in the module but is unused
    # in forward(); created for parameter-count parity, never evaluated.
    w4, b4 = lin(keys[14], keys[15], h3, action_dim, (2.0 / h3) ** 0.5)
    return {
        "w1": w1, "b1": b1, "w2": w2, "b2": b2, "w3": w3, "b3": b3,
        "w4_unused": w4, "b4_unused": b4,
        "wv1": wv1, "bv1": bv1, "wv2": wv2, "bv2": bv2,
        "wa1": wa1, "ba1": ba1, "wa2": wa2, "ba2": ba2,
    }


def prepare_params(master, action_dim):
    """Kernel-ready params: bf16 weights, fused heads, packed f32 biases."""
    f32, bf16 = jnp.float32, jnp.bfloat16
    hv = master["wv1"].shape[1]           # 64
    out2 = _round_up(1 + action_dim, 128)  # lane-dense second-stage width

    # Stage 1 of both heads fused along the output axis: (128, 128).
    wh1 = jnp.concatenate([master["wv1"], master["wa1"]], axis=1)
    bh1 = jnp.concatenate([master["bv1"], master["ba1"]], axis=1)

    # Stage 2 fused as a zero-padded block-diagonal: (128, 128).
    wh2 = jnp.zeros((wh1.shape[1], out2), f32)
    wh2 = wh2.at[:hv, 0:1].set(master["wv2"])
    wh2 = wh2.at[hv:, 1:1 + action_dim].set(master["wa2"])
    bh2 = jnp.zeros((1, out2), f32)
    bh2 = bh2.at[:, 0:1].set(master["bv2"])
    bh2 = bh2.at[:, 1:1 + action_dim].set(master["ba2"])

    biases = jnp.concatenate(
        [master["b1"], master["b2"], master["b3"], bh1, bh2], axis=1).astype(f32)

    return {
        "w1": master["w1"].astype(bf16),
        "w2": master["w2"].astype(bf16),
        "w3": master["w3"].astype(bf16),
        "wh1": wh1.astype(bf16),
        "wh2": wh2.astype(bf16),
        "biases": biases,
    }


def dqn_forward_ref(x, master, action_dim):
    """Pure-JAX reference of the PyTorch forward (eval mode), unfused layout,
    with weights quantized to bf16 / f32 accumulation exactly like the kernel."""
    bf16, f32 = jnp.bfloat16, jnp.float32

    def dot(a, w):
        return jnp.dot(a.astype(bf16), w.astype(bf16), preferred_element_type=f32)

    h1 = jnp.maximum(dot(x, master["w1"]) + master["b1"], 0.0)
    h2 = jnp.maximum(dot(h1, master["w2"]) + master["b2"], 0.0)
    shared = dot(h2, master["w3"]) + master["b3"]
    hv = jnp.maximum(dot(shared, master["wv1"]) + master["bv1"], 0.0)
    value = dot(hv, master["wv2"]) + master["bv2"]
    ha = jnp.maximum(dot(shared, master["wa1"]) + master["ba1"], 0.0)
    adv = dot(ha, master["wa2"]) + master["ba2"]
    return value + (adv - adv.mean(axis=1, keepdims=True))


if __name__ == "__main__":
    B, STATE_DIM, ACTION_DIM = 256, 32, 8   # B=256 -> 2 batch blocks of 128

    key = jax.random.PRNGKey(0)
    k_x, k_p = jax.random.split(key)
    x = jax.random.normal(k_x, (B, STATE_DIM), jnp.float32)

    master = init_params(k_p, STATE_DIM, ACTION_DIM)
    params = prepare_params(master, ACTION_DIM)

    q = dqn_forward(x, params, ACTION_DIM)
    q = jax.block_until_ready(q)

    q_ref = dqn_forward_ref(x, master, ACTION_DIM)
    assert q.shape == (B, ACTION_DIM)
    assert jnp.allclose(q, q_ref, atol=2e-3, rtol=2e-3), "mismatch vs reference"

    print("KERNEL_OK")
</pallas_src>

<mosaic_0001>
module attributes {stable_mosaic.version = 11 : i64} {
  func.func @dqn_kernel(%arg0: i32, %arg1: memref<128x32xf32, #tpu.memory_space<vmem>>, %arg2: memref<32x512xbf16, #tpu.memory_space<vmem>>, %arg3: memref<512x256xbf16, #tpu.memory_space<vmem>>, %arg4: memref<256x128xbf16, #tpu.memory_space<vmem>>, %arg5: memref<128x128xbf16, #tpu.memory_space<vmem>>, %arg6: memref<128x128xbf16, #tpu.memory_space<vmem>>, %arg7: memref<1x1152xf32, #tpu.memory_space<vmem>>, %arg8: memref<128x128xf32, #tpu.memory_space<vmem>>) attributes {dimension_semantics = [#tpu.dimension_semantics<parallel>], iteration_bounds = array<i64: 2>, scalar_prefetch = 0 : i64, scratch_operands = 0 : i64, tpu.core_type = #tpu.core_type<tc>, window_params = [{transform_indices = @transform_0, window_bounds = array<i64: 128, 32>}, {pipeline_mode = #tpu.pipeline_mode<synchronous>, transform_indices = @transform_1, window_bounds = array<i64: 32, 512>}, {pipeline_mode = #tpu.pipeline_mode<synchronous>, transform_indices = @transform_2, window_bounds = array<i64: 512, 256>}, {pipeline_mode = #tpu.pipeline_mode<synchronous>, transform_indices = @transform_3, window_bounds = array<i64: 256, 128>}, {pipeline_mode = #tpu.pipeline_mode<synchronous>, transform_indices = @transform_4, window_bounds = array<i64: 128, 128>}, {pipeline_mode = #tpu.pipeline_mode<synchronous>, transform_indices = @transform_5, window_bounds = array<i64: 128, 128>}, {pipeline_mode = #tpu.pipeline_mode<synchronous>, transform_indices = @transform_6, window_bounds = array<i64: 1, 1152>}, {transform_indices = @transform_7, window_bounds = array<i64: 128, 128>}]} {
    %c0 = arith.constant 0 : index
    %c0_0 = arith.constant 0 : index
    %0 = vector.load %arg1[%c0, %c0_0] : memref<128x32xf32, #tpu.memory_space<vmem>>, vector<128x32xf32>
    %1 = arith.truncf %0 : vector<128x32xf32> to vector<128x32xbf16>
    %c0_1 = arith.constant 0 : index
    %c0_2 = arith.constant 0 : index
    %2 = vector.load %arg2[%c0_1, %c0_2] : memref<32x512xbf16, #tpu.memory_space<vmem>>, vector<32x512xbf16>
    %cst = arith.constant dense<0.000000e+00> : vector<128x512xf32>
    %3 = tpu.matmul %1, %2, %cst {dimension_numbers = #tpu.dot_dimension_numbers<[1], [0], [0], [1], [0, 0, 1, 1], [], []>} : vector<128x32xbf16>, vector<32x512xbf16>, vector<128x512xf32> -> vector<128x512xf32>
    %c0_3 = arith.constant 0 : index
    %c0_4 = arith.constant 0 : index
    %4 = vector.load %arg7[%c0_3, %c0_4] : memref<1x1152xf32, #tpu.memory_space<vmem>>, vector<1x512xf32>
    %5 = vector.broadcast %4 : vector<1x512xf32> to vector<128x512xf32>
    %6 = arith.addf %3, %5 : vector<128x512xf32>
    %cst_5 = arith.constant 0.000000e+00 : f32
    %7 = vector.broadcast %cst_5 : f32 to vector<128x512xf32>
    %8 = arith.maximumf %6, %7 : vector<128x512xf32>
    %9 = arith.truncf %8 : vector<128x512xf32> to vector<128x512xbf16>
    %c0_6 = arith.constant 0 : index
    %c0_7 = arith.constant 0 : index
    %10 = vector.load %arg3[%c0_6, %c0_7] : memref<512x256xbf16, #tpu.memory_space<vmem>>, vector<512x256xbf16>
    %cst_8 = arith.constant dense<0.000000e+00> : vector<128x256xf32>
    %11 = tpu.matmul %9, %10, %cst_8 {dimension_numbers = #tpu.dot_dimension_numbers<[1], [0], [0], [1], [0, 0, 1, 1], [], []>} : vector<128x512xbf16>, vector<512x256xbf16>, vector<128x256xf32> -> vector<128x256xf32>
    %c0_9 = arith.constant 0 : index
    %c512 = arith.constant 512 : index
    %12 = vector.load %arg7[%c0_9, %c512] : memref<1x1152xf32, #tpu.memory_space<vmem>>, vector<1x256xf32>
    %13 = vector.broadcast %12 : vector<1x256xf32> to vector<128x256xf32>
    %14 = arith.addf %11, %13 : vector<128x256xf32>
    %cst_10 = arith.constant 0.000000e+00 : f32
    %15 = vector.broadcast %cst_10 : f32 to vector<128x256xf32>
    %16 = arith.maximumf %14, %15 : vector<128x256xf32>
    %17 = arith.truncf %16 : vector<128x256xf32> to vector<128x256xbf16>
    %c0_11 = arith.constant 0 : index
    %c0_12 = arith.constant 0 : index
    %18 = vector.load %arg4[%c0_11, %c0_12] : memref<256x128xbf16, #tpu.memory_space<vmem>>, vector<256x128xbf16>
    %cst_13 = arith.constant dense<0.000000e+00> : vector<128x128xf32>
    %19 = tpu.matmul %17, %18, %cst_13 {dimension_numbers = #tpu.dot_dimension_numbers<[1], [0], [0], [1], [0, 0, 1, 1], [], []>} : vector<128x256xbf16>, vector<256x128xbf16>, vector<128x128xf32> -> vector<128x128xf32>
    %c0_14 = arith.constant 0 : index
    %c768 = arith.constant 768 : index
    %20 = vector.load %arg7[%c0_14, %c768] : memref<1x1152xf32, #tpu.memory_space<vmem>>, vector<1x128xf32>
    %21 = vector.broadcast %20 : vector<1x128xf32> to vector<128x128xf32>
    %22 = arith.addf %19, %21 : vector<128x128xf32>
    %23 = arith.truncf %22 : vector<128x128xf32> to vector<128x128xbf16>
    %c0_15 = arith.constant 0 : index
    %c0_16 = arith.constant 0 : index
    %24 = vector.load %arg5[%c0_15, %c0_16] : memref<128x128xbf16, #tpu.memory_space<vmem>>, vector<128x128xbf16>
    %cst_17 = arith.constant dense<0.000000e+00> : vector<128x128xf32>
    %25 = tpu.matmul %23, %24, %cst_17 {dimension_numbers = #tpu.dot_dimension_numbers<[1], [0], [0], [1], [0, 0, 1, 1], [], []>} : vector<128x128xbf16>, vector<128x128xbf16>, vector<128x128xf32> -> vector<128x128xf32>
    %c0_18 = arith.constant 0 : index
    %c896 = arith.constant 896 : index
    %26 = vector.load %arg7[%c0_18, %c896] : memref<1x1152xf32, #tpu.memory_space<vmem>>, vector<1x128xf32>
    %27 = vector.broadcast %26 : vector<1x128xf32> to vector<128x128xf32>
    %28 = arith.addf %25, %27 : vector<128x128xf32>
    %cst_19 = arith.constant 0.000000e+00 : f32
    %29 = vector.broadcast %cst_19 : f32 to vector<128x128xf32>
    %30 = arith.maximumf %28, %29 : vector<128x128xf32>
    %31 = arith.truncf %30 : vector<128x128xf32> to vector<128x128xbf16>
    %c0_20 = arith.constant 0 : index
    %c0_21 = arith.constant 0 : index
    %32 = vector.load %arg6[%c0_20, %c0_21] : memref<128x128xbf16, #tpu.memory_space<vmem>>, vector<128x128xbf16>
    %cst_22 = arith.constant dense<0.000000e+00> : vector<128x128xf32>
    %33 = tpu.matmul %31, %32, %cst_22 {dimension_numbers = #tpu.dot_dimension_numbers<[1], [0], [0], [1], [0, 0, 1, 1], [], []>} : vector<128x128xbf16>, vector<128x128xbf16>, vector<128x128xf32> -> vector<128x128xf32>
    %c0_23 = arith.constant 0 : index
    %c1024 = arith.constant 1024 : index
    %34 = vector.load %arg7[%c0_23, %c1024] : memref<1x1152xf32, #tpu.memory_space<vmem>>, vector<1x128xf32>
    %35 = vector.broadcast %34 : vector<1x128xf32> to vector<128x128xf32>
    %36 = arith.addf %33, %35 : vector<128x128xf32>
    %37 = vector.extract_strided_slice %36 {offsets = [0, 0], sizes = [128, 1], strides = [1, 1]} : vector<128x128xf32> to vector<128x1xf32>
    %38 = vector.extract_strided_slice %36 {offsets = [0, 1], sizes = [128, 8], strides = [1, 1]} : vector<128x128xf32> to vector<128x8xf32>
    %cst_24 = arith.constant dense<0.000000e+00> : vector<128xf32>
    %39 = vector.multi_reduction <add>, %38, %cst_24 [1] : vector<128x8xf32> to vector<128xf32>
    %40 = vector.shape_cast %39 : vector<128xf32> to vector<128x1xf32>
    %cst_25 = arith.constant 8.000000e+00 : f32
    %41 = vector.broadcast %cst_25 : f32 to vector<128x1xf32>
    %42 = arith.divf %40, %41 : vector<128x1xf32>
    %43 = arith.subf %37, %42 : vector<128x1xf32>
    %44 = vector.broadcast %43 : vector<128x1xf32> to vector<128x128xf32>
    %45 = arith.addf %36, %44 : vector<128x128xf32>
    %c0_26 = arith.constant 0 : index
    %c0_27 = arith.constant 0 : index
    %46 = vector.load %arg8[%c0_26, %c0_27] : memref<128x128xf32, #tpu.memory_space<vmem>>, vector<128x128xf32>
    tpu.vector_store %arg8[%c0_26, %c0_27], %45 {strides = array<i32>} : memref<128x128xf32, #tpu.memory_space<vmem>>, vector<128x128xf32>,
    return
  }
  func.func @transform_0(%arg0: i32) -> (i32, i32) {
    %c0_i32 = arith.constant 0 : i32
    %c0_i32_0 = arith.constant 0 : i32
    return %arg0, %c0_i32 : i32, i32
  }
  func.func @transform_1(%arg0: i32) -> (i32, i32) {
    %c0_i32 = arith.constant 0 : i32
    %c0_i32_0 = arith.constant 0 : i32
    %c0_i32_1 = arith.constant 0 : i32
    return %c0_i32, %c0_i32_0 : i32, i32
  }
  func.func @transform_2(%arg0: i32) -> (i32, i32) {
    %c0_i32 = arith.constant 0 : i32
    %c0_i32_0 = arith.constant 0 : i32
    %c0_i32_1 = arith.constant 0 : i32
    return %c0_i32, %c0_i32_0 : i32, i32
  }
  func.func @transform_3(%arg0: i32) -> (i32, i32) {
    %c0_i32 = arith.constant 0 : i32
    %c0_i32_0 = arith.constant 0 : i32
    %c0_i32_1 = arith.constant 0 : i32
    return %c0_i32, %c0_i32_0 : i32, i32
  }
  func.func @transform_4(%arg0: i32) -> (i32, i32) {
    %c0_i32 = arith.constant 0 : i32
    %c0_i32_0 = arith.constant 0 : i32
    %c0_i32_1 = arith.constant 0 : i32
    return %c0_i32, %c0_i32_0 : i32, i32
  }
  func.func @transform_5(%arg0: i32) -> (i32, i32) {
    %c0_i32 = arith.constant 0 : i32
    %c0_i32_0 = arith.constant 0 : i32
    %c0_i32_1 = arith.constant 0 : i32
    return %c0_i32, %c0_i32_0 : i32, i32
  }
  func.func @transform_6(%arg0: i32) -> (i32, i32) {
    %c0_i32 = arith.constant 0 : i32
    %c0_i32_0 = arith.constant 0 : i32
    %c0_i32_1 = arith.constant 0 : i32
    return %c0_i32, %c0_i32_0 : i32, i32
  }
  func.func @transform_7(%arg0: i32) -> (i32, i32) {
    %c0_i32 = arith.constant 0 : i32
    %c0_i32_0 = arith.constant 0 : i32
    return %arg0, %c0_i32 : i32, i32
  }
}

</mosaic_0001>

<llo_original>
// kernel: dqn_forward.1
$region0: #{dqn_forward.1}
  #allocation0 [shape = 'u32[]', space=smem, size = 0x4, offset = 0x4, fixed_abs, tag = 'smem constant byte address 0x4 - core index']
  #allocation1 [shape = 'u32[144,128]{1,0:T(1,128)}', space=vmem, size = 0x12000, scoped, tag = 'internal scratch']
  %s0 = inlined_call_operand.vmem [shape: f32[256,32], index: 0, kind: input, shape index: {}]
  %s1 = inlined_call_operand.vmem [shape: bf16[32,512], index: 1, kind: input, shape index: {}]
  %s2 = inlined_call_operand.hbm [shape: bf16[512,256], index: 2, kind: input, shape index: {}]
  %s3 = inlined_call_operand.vmem [shape: bf16[256,128], index: 3, kind: input, shape index: {}]
  %s4 = inlined_call_operand.vmem [shape: bf16[128,128], index: 4, kind: input, shape index: {}]
  %s5 = inlined_call_operand.vmem [shape: bf16[128,128], index: 5, kind: input, shape index: {}]
  %s6 = inlined_call_operand.hbm [shape: f32[1,1152], index: 6, kind: input, shape index: {}]
  %s7 = inlined_call_operand.vmem [shape: f32[256,128], index: 7, kind: output, shape index: {}]
  %s8 = sld [smem:[#allocation0]]
  $region69: #{dqn_forward.1} parent=0
    _
  %s10 = ssub.s32 1, %s8
  %s11 = scalar_select 0, %s10, %s8
  $region1: #{dqn_forward.1} parent=0
    #allocation2 [shape = 'u8[262144]{0}', space=vmem, size = 0x40000, scoped, tag = 'input window, operand 2, single buffered']
    #allocation3 [shape = 's32[2]{0}', space=sflag, size = 0x8, scoped, tag = 'scoped memory for dqn_forward.1']
    #allocation4 [shape = 'u8[4608]{0}', space=vmem, size = 0x1400, scoped, tag = 'input window, operand 6, single buffered']
    #allocation5 [shape = 's32[1]{0}', space=sflag, size = 0x4, scoped, tag = 'scoped memory for dqn_forward.1']
    %12 = vsyncpa [#allocation3], 0
    %13 = vsyncpa [#allocation5], 0
    loop: start=0, step=1, limit=4
    $region2: #{dqn_forward.1} parent=1 // loop_pre_header
      _
    $region3: #{dqn_forward.1} parent=1 // loop_header
      %s15 = sphi 0, %s19
      %p16 = scmp.ge.s32.totalorder %s15, 4
      %s25 = sphi 0, %s27
      %s28 = sphi 0, %s25
      %s29 = sphi 0, %s28
      %s45 = sphi 0, %s29
      %s49 = sphi 0, %s49
      %s51 = sphi 0, %s49
      %s52 = sphi 0, %s51
      %s66 = sphi 0, %s52
      %s70 = sphi 0, %s70
      %s72 = sphi 0, %s70
      %s73 = sphi 0, %s72
      %s87 = sphi 0, %s73
      %s91 = sphi 0, %s91
      %s93 = sphi 0, %s91
      %s94 = sphi 0, %s93
      %s108 = sphi 0, %s94
      %s112 = sphi 0, %s112
      %s114 = sphi 0, %s112
      %s115 = sphi 0, %s114
      %s129 = sphi 0, %s115
      %s133 = sphi 0, %s133
      %s135 = sphi 0, %s133
      %s136 = sphi 0, %s135
      %s150 = sphi 0, %s136
      %s154 = sphi 0, %s154
      %s156 = sphi 0, %s154
      %s157 = sphi 0, %s156
      %s171 = sphi 0, %s157
      %s177 = sphi 0, %s179
      %s180 = sphi 0, %s177
      %s181 = sphi 0, %s180
      %s197 = sphi 0, %s181
    $region4: #{dqn_forward.1} parent=1 // loop_header_branch
      %18 = sbr.rel (%p16) target = $region8
    $region5: #{dqn_forward.1} parent=1 // loop_body
      %s20 = ssub.s32 %s15, 1
      %s21 = ssub.s32 %s15, 2
      %s22 = sadd.s32 %s15, 1
      %s23 = ssub.s32 %s15, %s22
      %p24 = scmp.eq.s32.totalorder %s23, 0
      %s26 = sadd.s32 %s25, 1
      %s27 = scalar_select %p24, %s25, %s26
      %p30 = pneg %p24
      %p31 = scmp.eq.s32.totalorder %s15, 1
      %p32 = por %p30, %p31
      %p33 = scmp.ne.s32.totalorder %s25, %s28
      %p34 = scmp.eq.s32.totalorder %s15, 0
      %p35 = por %p33, %p34
      %p36 = scmp.ne.s32.totalorder %s25, %s28
      %p37 = scmp.eq.s32.totalorder %s20, 1
      %p38 = por %p36, %p37
      %p39 = scmp.ne.s32.totalorder %s28, %s29
      %p40 = scmp.eq.s32.totalorder %s20, 0
      %p41 = por %p39, %p40
      %p42 = scmp.ne.s32.totalorder %s28, %s29
      %p43 = scmp.eq.s32.totalorder %s21, 1
      %p44 = por %p42, %p43
      %p46 = scmp.ne.s32.totalorder %s29, %s45
      %p47 = scmp.eq.s32.totalorder %s21, 0
      %p48 = por %p46, %p47
      %s50 = sadd.s32 %s49, 1
      %p53 = scmp.eq.s32.totalorder %s15, 1
      %p54 = scmp.ne.s32.totalorder %s49, %s51
      %p55 = scmp.eq.s32.totalorder %s15, 0
      %p56 = por %p54, %p55
      %p57 = scmp.ne.s32.totalorder %s49, %s51
      %p58 = scmp.eq.s32.totalorder %s20, 1
      %p59 = por %p57, %p58
      %p60 = scmp.ne.s32.totalorder %s51, %s52
      %p61 = scmp.eq.s32.totalorder %s20, 0
      %p62 = por %p60, %p61
      %p63 = scmp.ne.s32.totalorder %s51, %s52
      %p64 = scmp.eq.s32.totalorder %s21, 1
      %p65 = por %p63, %p64
      %p67 = scmp.ne.s32.totalorder %s52, %s66
      %p68 = scmp.eq.s32.totalorder %s21, 0
      %p69 = por %p67, %p68
      %s71 = sadd.s32 %s70, 1
      %p74 = scmp.eq.s32.totalorder %s15, 1
      %p75 = scmp.ne.s32.totalorder %s70, %s72
      %p76 = scmp.eq.s32.totalorder %s15, 0
      %p77 = por %p75, %p76
      %p78 = scmp.ne.s32.totalorder %s70, %s72
      %p79 = scmp.eq.s32.totalorder %s20, 1
      %p80 = por %p78, %p79
      %p81 = scmp.ne.s32.totalorder %s72, %s73
      %p82 = scmp.eq.s32.totalorder %s20, 0
      %p83 = por %p81, %p82
      %p84 = scmp.ne.s32.totalorder %s72, %s73
      %p85 = scmp.eq.s32.totalorder %s21, 1
      %p86 = por %p84, %p85
      %p88 = scmp.ne.s32.totalorder %s73, %s87
      %p89 = scmp.eq.s32.totalorder %s21, 0
      %p90 = por %p88, %p89
      %s92 = sadd.s32 %s91, 1
      %p95 = scmp.eq.s32.totalorder %s15, 1
      %p96 = scmp.ne.s32.totalorder %s91, %s93
      %p97 = scmp.eq.s32.totalorder %s15, 0
      %p98 = por %p96, %p97
      %p99 = scmp.ne.s32.totalorder %s91, %s93
      %p100 = scmp.eq.s32.totalorder %s20, 1
      %p101 = por %p99, %p100
      %p102 = scmp.ne.s32.totalorder %s93, %s94
      %p103 = scmp.eq.s32.totalorder %s20, 0
      %p104 = por %p102, %p103
      %p105 = scmp.ne.s32.totalorder %s93, %s94
      %p106 = scmp.eq.s32.totalorder %s21, 1
      %p107 = por %p105, %p106
      %p109 = scmp.ne.s32.totalorder %s94, %s108
      %p110 = scmp.eq.s32.totalorder %s21, 0
      %p111 = por %p109, %p110
      %s113 = sadd.s32 %s112, 1
      %p116 = scmp.eq.s32.totalorder %s15, 1
      %p117 = scmp.ne.s32.totalorder %s112, %s114
      %p118 = scmp.eq.s32.totalorder %s15, 0
      %p119 = por %p117, %p118
      %p120 = scmp.ne.s32.totalorder %s112, %s114
      %p121 = scmp.eq.s32.totalorder %s20, 1
      %p122 = por %p120, %p121
      %p123 = scmp.ne.s32.totalorder %s114, %s115
      %p124 = scmp.eq.s32.totalorder %s20, 0
      %p125 = por %p123, %p124
      %p126 = scmp.ne.s32.totalorder %s114, %s115
      %p127 = scmp.eq.s32.totalorder %s21, 1
      %p128 = por %p126, %p127
      %p130 = scmp.ne.s32.totalorder %s115, %s129
      %p131 = scmp.eq.s32.totalorder %s21, 0
      %p132 = por %p130, %p131
      %s134 = sadd.s32 %s133, 1
      %p137 = scmp.eq.s32.totalorder %s15, 1
      %p138 = scmp.ne.s32.totalorder %s133, %s135
      %p139 = scmp.eq.s32.totalorder %s15, 0
      %p140 = por %p138, %p139
      %p141 = scmp.ne.s32.totalorder %s133, %s135
      %p142 = scmp.eq.s32.totalorder %s20, 1
      %p143 = por %p141, %p142
      %p144 = scmp.ne.s32.totalorder %s135, %s136
      %p145 = scmp.eq.s32.totalorder %s20, 0
      %p146 = por %p144, %p145
      %p147 = scmp.ne.s32.totalorder %s135, %s136
      %p148 = scmp.eq.s32.totalorder %s21, 1
      %p149 = por %p147, %p148
      %p151 = scmp.ne.s32.totalorder %s136, %s150
      %p152 = scmp.eq.s32.totalorder %s21, 0
      %p153 = por %p151, %p152
      %s155 = sadd.s32 %s154, 1
      %p158 = scmp.eq.s32.totalorder %s15, 1
      %p159 = scmp.ne.s32.totalorder %s154, %s156
      %p160 = scmp.eq.s32.totalorder %s15, 0
      %p161 = por %p159, %p160
      %p162 = scmp.ne.s32.totalorder %s154, %s156
      %p163 = scmp.eq.s32.totalorder %s20, 1
      %p164 = por %p162, %p163
      %p165 = scmp.ne.s32.totalorder %s156, %s157
      %p166 = scmp.eq.s32.totalorder %s20, 0
      %p167 = por %p165, %p166
      %p168 = scmp.ne.s32.totalorder %s156, %s157
      %p169 = scmp.eq.s32.totalorder %s21, 1
      %p170 = por %p168, %p169
      %p172 = scmp.ne.s32.totalorder %s157, %s171
      %p173 = scmp.eq.s32.totalorder %s21, 0
      %p174 = por %p172, %p173
      %s175 = ssub.s32 %s15, %s22
      %p176 = scmp.eq.s32.totalorder %s175, 0
      %s178 = sadd.s32 %s177, 1
      %s179 = scalar_select %p176, %s177, %s178
      %p182 = pneg %p176
      %p183 = scmp.eq.s32.totalorder %s15, 1
      %p184 = por %p182, %p183
      %p185 = scmp.ne.s32.totalorder %s177, %s180
      %p186 = scmp.eq.s32.totalorder %s15, 0
      %p187 = por %p185, %p186
      %p188 = scmp.ne.s32.totalorder %s177, %s180
      %p189 = scmp.eq.s32.totalorder %s20, 1
      %p190 = por %p188, %p189
      %p191 = scmp.ne.s32.totalorder %s180, %s181
      %p192 = scmp.eq.s32.totalorder %s20, 0
      %p193 = por %p191, %p192
      %p194 = scmp.ne.s32.totalorder %s180, %s181
      %p195 = scmp.eq.s32.totalorder %s21, 1
      %p196 = por %p194, %p195
      %p198 = scmp.ne.s32.totalorder %s181, %s197
      %p199 = scmp.eq.s32.totalorder %s21, 0
      %p200 = por %p198, %p199
      %p201 = scmp.le.s32.totalorder 1, %s15
      %p202 = scmp.lt.s32.totalorder %s15, 3
      %p203 = pnand %p201, %p202
      %p204 = pneg %p203
      // Predicated region
      $region9: #{dqn_forward.1} parent=5 // pred_check
        _
      $region10: #{dqn_forward.1} parent=5 // pred_check_branch
        %206 = sbr.rel (%p203) target = $region12
      $region11: #{dqn_forward.1} parent=5 // pred_region
        %s207 = ssub.s32 %s15, 1
        // Predicated region
        $region13: #{dqn_forward.1} parent=11 // pred_check
          %p208 = pneg %p62
        $region14: #{dqn_forward.1} parent=11 // pred_check_branch
          %210 = sbr.rel (%p208) target = $region16
        $region15: #{dqn_forward.1} parent=11 // pred_region
          _
        $region16: #{dqn_forward.1} parent=11 // pred_fallthru
          _
        // Predicated region
        $region17: #{dqn_forward.1} parent=11 // pred_check
          %p211 = pneg %p83
        $region18: #{dqn_forward.1} parent=11 // pred_check_branch
          %213 = sbr.rel (%p211) target = $region20
        $region19: #{dqn_forward.1} parent=11 // pred_region
          %s215 = ssub.s32 8192, 8192
          %216 = vsyncadd [#allocation3], %s215
          %s217 = sshll.u32 [#allocation2], 4
          %s218 = int_to_ptr.vmem [resolvable:$true] %s217
          %223 = dma.hbm_to_vmem [thread:$0]  %s2, 8192, %s218, [#allocation3], 128, 128, 8
        $region20: #{dqn_forward.1} parent=11 // pred_fallthru
          _
        // Predicated region
        $region21: #{dqn_forward.1} parent=11 // pred_check
          %p224 = pneg %p104
        $region22: #{dqn_forward.1} parent=11 // pred_check_branch
          %226 = sbr.rel (%p224) target = $region24
        $region23: #{dqn_forward.1} parent=11 // pred_region
          _
        $region24: #{dqn_forward.1} parent=11 // pred_fallthru
          _
        // Predicated region
        $region25: #{dqn_forward.1} parent=11 // pred_check
          %p227 = pneg %p125
        $region26: #{dqn_forward.1} parent=11 // pred_check_branch
          %229 = sbr.rel (%p227) target = $region28
        $region27: #{dqn_forward.1} parent=11 // pred_region
          _
        $region28: #{dqn_forward.1} parent=11 // pred_fallthru
          _
        // Predicated region
        $region29: #{dqn_forward.1} parent=11 // pred_check
          %p230 = pneg %p146
        $region30: #{dqn_forward.1} parent=11 // pred_check_branch
          %232 = sbr.rel (%p230) target = $region32
        $region31: #{dqn_forward.1} parent=11 // pred_region
          _
        $region32: #{dqn_forward.1} parent=11 // pred_fallthru
          _
        // Predicated region
        $region33: #{dqn_forward.1} parent=11 // pred_check
          %p233 = pneg %p167
        $region34: #{dqn_forward.1} parent=11 // pred_check_branch
          %235 = sbr.rel (%p233) target = $region36
        $region35: #{dqn_forward.1} parent=11 // pred_region
          %s237 = ssub.s32 144, 144
          %238 = vsyncadd [#allocation5], %s237
          %s240 = sshll.u32 [#allocation4], 4
          %s241 = int_to_ptr.vmem [resolvable:$true] %s240
          %243 = dma.hbm_to_vmem [thread:$0]  %s6, 144, %s241, [#allocation5]
        $region36: #{dqn_forward.1} parent=11 // pred_fallthru
          _
      $region12: #{dqn_forward.1} parent=5 // pred_fallthru
        _
      %p244 = scmp.lt.s32.totalorder %s15, 2
      // Predicated region
      $region37: #{dqn_forward.1} parent=5 // pred_check
        %p245 = pneg %p244
      $region38: #{dqn_forward.1} parent=5 // pred_check_branch
        %247 = sbr.rel (%p245) target = $region40
      $region39: #{dqn_forward.1} parent=5 // pred_region
        // Predicated region
        $region41: #{dqn_forward.1} parent=39 // pred_check
          %p248 = pneg %p35
        $region42: #{dqn_forward.1} parent=39 // pred_check_branch
          %250 = sbr.rel (%p248) target = $region44
        $region43: #{dqn_forward.1} parent=39 // pred_region
          %s251 = smul.u32 16, %s15
          %p252 = scmp.lt.s32.totalorder %s251, 31
          %s253 = scalar_select %p252, %s251, 31
          %s254 = smul.addr %s253, 8
          %s255 = scalar_lea.vmem %s0, %s254
          %s256 = smul.u32 16, %s15
        $region44: #{dqn_forward.1} parent=39 // pred_fallthru
          _
      $region40: #{dqn_forward.1} parent=5 // pred_fallthru
        _
      %p257 = scmp.le.s32.totalorder 1, %s15
      %p258 = scmp.lt.s32.totalorder %s15, 3
      %p259 = pnand %p257, %p258
      %p260 = pneg %p259
      // Predicated region
      $region45: #{dqn_forward.1} parent=5 // pred_check
        _
      $region46: #{dqn_forward.1} parent=5 // pred_check_branch
        %262 = sbr.rel (%p259) target = $region48
      $region47: #{dqn_forward.1} parent=5 // pred_region
        %s263 = ssub.s32 %s15, 1
        // Predicated region
        $region49: #{dqn_forward.1} parent=47 // pred_check
          %p264 = pneg %p83
        $region50: #{dqn_forward.1} parent=47 // pred_check_branch
          %266 = sbr.rel (%p264) target = $region52
        $region51: #{dqn_forward.1} parent=47 // pred_region
          %267 = dma.done [#allocation3], 8192
        $region52: #{dqn_forward.1} parent=47 // pred_fallthru
          _
        // Predicated region
        $region53: #{dqn_forward.1} parent=47 // pred_check
          %p268 = pneg %p167
        $region54: #{dqn_forward.1} parent=47 // pred_check_branch
          %270 = sbr.rel (%p268) target = $region56
        $region55: #{dqn_forward.1} parent=47 // pred_region
          %271 = dma.done [#allocation5], 144
        $region56: #{dqn_forward.1} parent=47 // pred_fallthru
          _
        %s272 = smul.u32 16, %s20
        %p273 = scmp.lt.s32.totalorder %s272, 31
        %s274 = scalar_select %p273, %s272, 31
        %s275 = smul.addr %s274, 8
        %s276 = scalar_lea.vmem %s0, %s275
        %p277 = pneg %p41
        %p278 = pneg %p38
        %p279 = pneg %p62
        %p280 = pneg %p59
        %p281 = pneg %p83
        %p282 = pneg %p80
        %p283 = pneg %p104
        %p284 = pneg %p101
        %p285 = pneg %p125
        %p286 = pneg %p122
        %p287 = pneg %p146
        %p288 = pneg %p143
        %p289 = pneg %p167
        %p290 = pneg %p164
        %p291 = pneg %p193
        %p292 = pneg %p190
        %s293 = smul.u32 16, %s20
        %p294 = scmp.lt.s32.totalorder %s293, 31
        %s295 = scalar_select %p294, %s293, 31
        %s296 = smul.addr %s295, 8
        %s297 = scalar_lea.vmem %s7, %s296
        %s298 = smul.u32 16, %s20
        %p299 = scmp.lt.s32.totalorder %s298, 31
        %s300 = scalar_select %p299, %s298, 31
        %s301 = smul.addr %s300, 8
        %s302 = scalar_lea.vmem %s0, %s301
        %s303 = smul.u32 16, %s20
        %s304 = smul.u32 16, %s20
        %p305 = scmp.lt.s32.totalorder %s304, 31
        %s306 = scalar_select %p305, %s304, 31
        %s307 = smul.addr %s306, 8
        %s308 = scalar_lea.vmem %s7, %s307
        %s309 = smul.u32 16, %s20
        %v311 = vld [vmem:[%s302] sm:$0xff]
        %v312 = vld [vmem:[%s302 + $0x8] sm:$0xff]
        %v313 = vld [vmem:[%s302 + $0x10] sm:$0xff]
        %v314 = vld [vmem:[%s302 + $0x18] sm:$0xff]
        %v315 = vld [vmem:[%s302 + $0x20] sm:$0xff]
        %v316 = vld [vmem:[%s302 + $0x28] sm:$0xff]
        %v317 = vld [vmem:[%s302 + $0x30] sm:$0xff]
        %v318 = vld [vmem:[%s302 + $0x38] sm:$0xff]
        %v319 = vld [vmem:[%s302 + $0x40] sm:$0xff]
        %v320 = vld [vmem:[%s302 + $0x48] sm:$0xff]
        %v321 = vld [vmem:[%s302 + $0x50] sm:$0xff]
        %v322 = vld [vmem:[%s302 + $0x58] sm:$0xff]
        %v323 = vld [vmem:[%s302 + $0x60] sm:$0xff]
        %v324 = vld [vmem:[%s302 + $0x68] sm:$0xff]
        %v325 = vld [vmem:[%s302 + $0x70] sm:$0xff]
        %v326 = vld [vmem:[%s302 + $0x78] sm:$0xff]
        %v327 = vpack.c.bf16 %v312, %v311
        %v328 = vpack.c.bf16 %v314, %v313
        %v329 = vpack.c.bf16 %v316, %v315
        %v330 = vpack.c.bf16 %v318, %v317
        %v331 = vpack.c.bf16 %v320, %v319
        %v332 = vpack.c.bf16 %v322, %v321
        %v333 = vpack.c.bf16 %v324, %v323
        %v334 = vpack.c.bf16 %v326, %v325
        %v335 = vld [vmem:[%s1] sm:$0xff]
        %v336 = vld [vmem:[%s1 + $0x8] sm:$0xff]
        %v337 = vld [vmem:[%s1 + $0x10] sm:$0xff]
        %v338 = vld [vmem:[%s1 + $0x18] sm:$0xff]
        %v339 = vld [vmem:[%s1 + $0x20] sm:$0xff]
        %v340 = vld [vmem:[%s1 + $0x28] sm:$0xff]
        %v341 = vld [vmem:[%s1 + $0x30] sm:$0xff]
        %v342 = vld [vmem:[%s1 + $0x38] sm:$0xff]
        %v343 = vld [vmem:[#allocation4] sm:$0xf]
        %v345 = vlaneseq
        %v346 = vshrl.u32 %v345, 7
        %v347 = vsub.s32 0, %v346
        %v348 = vrot.slane %v343, %v347
        %v349 = vlaneseq
        %v350 = vshrl.u32 %v349, 7
        %v351 = vsub.s32 1, %v350
        %v352 = vrot.slane %v343, %v351
        %v353 = vlaneseq
        %v354 = vshrl.u32 %v353, 7
        %v355 = vsub.s32 2, %v354
        %v356 = vrot.slane %v343, %v355
        %v357 = vlaneseq
        %v358 = vshrl.u32 %v357, 7
        %v359 = vsub.s32 3, %v358
        %v360 = vrot.slane %v343, %v359
        %v373 = vunpack.c.l.b16 %v335
        %v374 = vunpack.c.h.b16 %v335
        %v375 = vunpack.c.l.b16 %v336
        %v376 = vunpack.c.h.b16 %v336
        %v377 = vunpack.c.l.b16 %v337
        %v378 = vunpack.c.h.b16 %v337
        %v379 = vunpack.c.l.b16 %v338
        %v380 = vunpack.c.h.b16 %v338
        %v381 = vunpack.c.l.b16 %v339
        %v382 = vunpack.c.h.b16 %v339
        %v383 = vunpack.c.l.b16 %v340
        %v384 = vunpack.c.h.b16 %v340
        %v385 = vunpack.c.l.b16 %v341
        %v386 = vunpack.c.h.b16 %v341
        %v387 = vunpack.c.l.b16 %v342
        %v388 = vunpack.c.h.b16 %v342
        %v389 = vpack.c.b16 %v377, %v373
        %v390 = vpack.c.b16 %v378, %v374
        %v391 = vpack.c.b16 %v379, %v375
        %v392 = vpack.c.b16 %v380, %v376
        %v393 = vpack.c.b16 %v385, %v381
        %v394 = vpack.c.b16 %v386, %v382
        %v395 = vpack.c.b16 %v387, %v383
        %v396 = vpack.c.b16 %v388, %v384
        %vm405 = vcmask 261120
        %v407 = vsel %vm405, %v327, 0
        %v410 = vsel %vm405, %v328, 0
        %v413 = vsel %vm405, %v329, 0
        %v416 = vsel %vm405, %v330, 0
        %v419 = vsel %vm405, %v331, 0
        %v422 = vsel %vm405, %v332, 0
        %v425 = vsel %vm405, %v333, 0
        %v428 = vsel %vm405, %v334, 0
        %430 = vmatprep.subr.bf16.mxu0 %v390
        %431 = vmatpush1.bf16.msra.mxu0 %v389
        %432 = vmatprep.subr.bf16.mxu0 %v394
        %433 = vmatpush1.bf16.msra.mxu0 %v393
        %434 = vmatprep.subr.bf16.mxu0 0
        %435 = vmatpush1.bf16.msra.mxu0 0
        %436 = vmatprep.subr.bf16.mxu0 0
        %437 = vmatpush1.bf16.msra.mxu0 0
        %438 = vmatprep.subr.bf16.mxu0 0
        %439 = vmatpush1.bf16.msra.mxu0 0
        %440 = vmatprep.subr.bf16.mxu0 0
        %441 = vmatpush1.bf16.msra.mxu0 0
        %442 = vmatprep.subr.bf16.mxu0 0
        %443 = vmatpush1.bf16.msra.mxu0 0
        %444 = vmatprep.subr.bf16.mxu0 0
        %445 = vmatpush1.bf16.msra.mxu0 0
        %446 = vmatprep.subr.bf16.mxu0 0
        %447 = vmatpush1.bf16.msra.mxu0 0
        %448 = vmatprep.subr.bf16.mxu0 0
        %449 = vmatpush1.bf16.msra.mxu0 0
        %450 = vmatprep.subr.bf16.mxu0 0
        %451 = vmatpush1.bf16.msra.mxu0 0
        %452 = vmatprep.subr.bf16.mxu0 0
        %453 = vmatpush1.bf16.msra.mxu0 0
        %454 = vmatprep.subr.bf16.mxu0 0
        %455 = vmatpush1.bf16.msra.mxu0 0
        %456 = vmatprep.subr.bf16.mxu0 0
        %457 = vmatpush1.bf16.msra.mxu0 0
        %458 = vmatprep.subr.bf16.mxu0 0
        %459 = vmatpush1.bf16.msra.mxu0 0
        %460 = vmatprep.subr.bf16.mxu0 0
        %461 = vmatpush1.bf16.msra.mxu0 0
        %462 = vmatprep.mubr.bf16.mxu0 0
        %463 = vmatmul.mubr.bf16.gmra.mrb[0].mxu0 %v407
        %v464 = vpop.f32.mrb[0].mxu0
        %v465 = vadd.f32 %v348, %v464
        %v466 = vpop.f32.mrb[0].mxu0
        %v467 = vadd.f32 %v352, %v466
        %v468 = vpop.f32.mrb[0].mxu0
        %v469 = vadd.f32 %v348, %v468
        %v470 = vpop.f32.mrb[0].mxu0
        %v471 = vadd.f32 %v352, %v470
        %472 = vmatprep.mubr.bf16.mxu0 0
        %473 = vmatmul.mubr.bf16.gmra.mrb[0].mxu0 %v410
        %v474 = vpop.f32.mrb[0].mxu0
        %v475 = vadd.f32 %v348, %v474
        %v476 = vpop.f32.mrb[0].mxu0
        %v477 = vadd.f32 %v352, %v476
        %v478 = vpop.f32.mrb[0].mxu0
        %v479 = vadd.f32 %v348, %v478
        %v480 = vpop.f32.mrb[0].mxu0
        %v481 = vadd.f32 %v352, %v480
        %482 = vmatprep.mubr.bf16.mxu0 0
        %483 = vmatmul.mubr.bf16.gmra.mrb[0].mxu0 %v413
        %v484 = vpop.f32.mrb[0].mxu0
        %v485 = vadd.f32 %v348, %v484
        %v486 = vpop.f32.mrb[0].mxu0
        %v487 = vadd.f32 %v352, %v486
        %v488 = vpop.f32.mrb[0].mxu0
        %v489 = vadd.f32 %v348, %v488
        %v490 = vpop.f32.mrb[0].mxu0
        %v491 = vadd.f32 %v352, %v490
        %492 = vmatprep.mubr.bf16.mxu0 0
        %493 = vmatmul.mubr.bf16.gmra.mrb[0].mxu0 %v416
        %v494 = vpop.f32.mrb[0].mxu0
        %v495 = vadd.f32 %v348, %v494
        %v496 = vpop.f32.mrb[0].mxu0
        %v497 = vadd.f32 %v352, %v496
        %v498 = vpop.f32.mrb[0].mxu0
        %v499 = vadd.f32 %v348, %v498
        %v500 = vpop.f32.mrb[0].mxu0
        %v501 = vadd.f32 %v352, %v500
        %502 = vmatprep.mubr.bf16.mxu0 0
        %503 = vmatmul.mubr.bf16.gmra.mrb[0].mxu0 %v419
        %v504 = vpop.f32.mrb[0].mxu0
        %v505 = vadd.f32 %v348, %v504
        %v506 = vpop.f32.mrb[0].mxu0
        %v507 = vadd.f32 %v352, %v506
        %v508 = vpop.f32.mrb[0].mxu0
        %v509 = vadd.f32 %v348, %v508
        %v510 = vpop.f32.mrb[0].mxu0
        %v511 = vadd.f32 %v352, %v510
        %512 = vmatprep.mubr.bf16.mxu0 0
        %513 = vmatmul.mubr.bf16.gmra.mrb[0].mxu0 %v422
        %v514 = vpop.f32.mrb[0].mxu0
        %v515 = vadd.f32 %v348, %v514
        %v516 = vpop.f32.mrb[0].mxu0
        %v517 = vadd.f32 %v352, %v516
        %v518 = vpop.f32.mrb[0].mxu0
        %v519 = vadd.f32 %v348, %v518
        %v520 = vpop.f32.mrb[0].mxu0
        %v521 = vadd.f32 %v352, %v520
        %522 = vmatprep.mubr.bf16.mxu0 0
        %523 = vmatmul.mubr.bf16.gmra.mrb[0].mxu0 %v425
        %v524 = vpop.f32.mrb[0].mxu0
        %v525 = vadd.f32 %v348, %v524
        %v526 = vpop.f32.mrb[0].mxu0
        %v527 = vadd.f32 %v352, %v526
        %v528 = vpop.f32.mrb[0].mxu0
        %v529 = vadd.f32 %v348, %v528
        %v530 = vpop.f32.mrb[0].mxu0
        %v531 = vadd.f32 %v352, %v530
        %532 = vmatprep.mubr.bf16.mxu0 0
        %533 = vmatmul.mubr.bf16.gmra.mrb[0].mxu0 %v428
        %v534 = vpop.f32.mrb[0].mxu0
        %v535 = vadd.f32 %v348, %v534
        %v536 = vpop.f32.mrb[0].mxu0
        %v537 = vadd.f32 %v352, %v536
        %v538 = vpop.f32.mrb[0].mxu0
        %v539 = vadd.f32 %v348, %v538
        %v540 = vpop.f32.mrb[0].mxu0
        %v541 = vadd.f32 %v352, %v540
        %542 = vdwg.mxu0
        %543 = vmatprep.subr.bf16.mxu0 %v392
        %544 = vmatpush1.bf16.msra.mxu0 %v391
        %545 = vmatprep.subr.bf16.mxu0 %v396
        %546 = vmatpush1.bf16.msra.mxu0 %v395
        %547 = vmatprep.subr.bf16.mxu0 0
        %548 = vmatpush1.bf16.msra.mxu0 0
        %549 = vmatprep.subr.bf16.mxu0 0
        %550 = vmatpush1.bf16.msra.mxu0 0
        %551 = vmatprep.subr.bf16.mxu0 0
        %552 = vmatpush1.bf16.msra.mxu0 0
        %553 = vmatprep.subr.bf16.mxu0 0
        %554 = vmatpush1.bf16.msra.mxu0 0
        %555 = vmatprep.subr.bf16.mxu0 0
        %556 = vmatpush1.bf16.msra.mxu0 0
        %557 = vmatprep.subr.bf16.mxu0 0
        %558 = vmatpush1.bf16.msra.mxu0 0
        %559 = vmatprep.subr.bf16.mxu0 0
        %560 = vmatpush1.bf16.msra.mxu0 0
        %561 = vmatprep.subr.bf16.mxu0 0
        %562 = vmatpush1.bf16.msra.mxu0 0
        %563 = vmatprep.subr.bf16.mxu0 0
        %564 = vmatpush1.bf16.msra.mxu0 0
        %565 = vmatprep.subr.bf16.mxu0 0
        %566 = vmatpush1.bf16.msra.mxu0 0
        %567 = vmatprep.subr.bf16.mxu0 0
        %568 = vmatpush1.bf16.msra.mxu0 0
        %569 = vmatprep.subr.bf16.mxu0 0
        %570 = vmatpush1.bf16.msra.mxu0 0
        %571 = vmatprep.subr.bf16.mxu0 0
        %572 = vmatpush1.bf16.msra.mxu0 0
        %573 = vmatprep.subr.bf16.mxu0 0
        %574 = vmatpush1.bf16.msra.mxu0 0
        %575 = vmatprep.mubr.bf16.mxu0 0
        %576 = vmatmul.mubr.bf16.gmra.mrb[0].mxu0 %v407
        %v577 = vpop.f32.mrb[0].mxu0
        %v578 = vadd.f32 %v356, %v577
        %v579 = vpop.f32.mrb[0].mxu0
        %v580 = vadd.f32 %v360, %v579
        %v581 = vpop.f32.mrb[0].mxu0
        %v582 = vadd.f32 %v356, %v581
        %v583 = vpop.f32.mrb[0].mxu0
        %v584 = vadd.f32 %v360, %v583
        %585 = vmatprep.mubr.bf16.mxu0 0
        %586 = vmatmul.mubr.bf16.gmra.mrb[0].mxu0 %v410
        %v587 = vpop.f32.mrb[0].mxu0
        %v588 = vadd.f32 %v356, %v587
        %v589 = vpop.f32.mrb[0].mxu0
        %v590 = vadd.f32 %v360, %v589
        %v591 = vpop.f32.mrb[0].mxu0
        %v592 = vadd.f32 %v356, %v591
        %v593 = vpop.f32.mrb[0].mxu0
        %v594 = vadd.f32 %v360, %v593
        %595 = vmatprep.mubr.bf16.mxu0 0
        %596 = vmatmul.mubr.bf16.gmra.mrb[0].mxu0 %v413
        %v597 = vpop.f32.mrb[0].mxu0
        %v598 = vadd.f32 %v356, %v597
        %v599 = vpop.f32.mrb[0].mxu0
        %v600 = vadd.f32 %v360, %v599
        %v601 = vpop.f32.mrb[0].mxu0
        %v602 = vadd.f32 %v356, %v601
        %v603 = vpop.f32.mrb[0].mxu0
        %v604 = vadd.f32 %v360, %v603
        %605 = vmatprep.mubr.bf16.mxu0 0
        %606 = vmatmul.mubr.bf16.gmra.mrb[0].mxu0 %v416
        %v607 = vpop.f32.mrb[0].mxu0
        %v608 = vadd.f32 %v356, %v607
        %v609 = vpop.f32.mrb[0].mxu0
        %v610 = vadd.f32 %v360, %v609
        %v611 = vpop.f32.mrb[0].mxu0
        %v612 = vadd.f32 %v356, %v611
        %v613 = vpop.f32.mrb[0].mxu0
        %v614 = vadd.f32 %v360, %v613
        %615 = vmatprep.mubr.bf16.mxu0 0
        %616 = vmatmul.mubr.bf16.gmra.mrb[0].mxu0 %v419
        %v617 = vpop.f32.mrb[0].mxu0
        %v618 = vadd.f32 %v356, %v617
        %v619 = vpop.f32.mrb[0].mxu0
        %v620 = vadd.f32 %v360, %v619
        %v621 = vpop.f32.mrb[0].mxu0
        %v622 = vadd.f32 %v356, %v621
        %v623 = vpop.f32.mrb[0].mxu0
        %v624 = vadd.f32 %v360, %v623
        %625 = vmatprep.mubr.bf16.mxu0 0
        %626 = vmatmul.mubr.bf16.gmra.mrb[0].mxu0 %v422
        %v627 = vpop.f32.mrb[0].mxu0
        %v628 = vadd.f32 %v356, %v627
        %v629 = vpop.f32.mrb[0].mxu0
        %v630 = vadd.f32 %v360, %v629
        %v631 = vpop.f32.mrb[0].mxu0
        %v632 = vadd.f32 %v356, %v631
        %v633 = vpop.f32.mrb[0].mxu0
        %v634 = vadd.f32 %v360, %v633
        %635 = vmatprep.mubr.bf16.mxu0 0
        %636 = vmatmul.mubr.bf16.gmra.mrb[0].mxu0 %v425
        %v637 = vpop.f32.mrb[0].mxu0
        %v638 = vadd.f32 %v356, %v637
        %v639 = vpop.f32.mrb[0].mxu0
        %v640 = vadd.f32 %v360, %v639
        %v641 = vpop.f32.mrb[0].mxu0
        %v642 = vadd.f32 %v356, %v641
        %v643 = vpop.f32.mrb[0].mxu0
        %v644 = vadd.f32 %v360, %v643
        %645 = vmatprep.mubr.bf16.mxu0 0
        %646 = vmatmul.mubr.bf16.gmra.mrb[0].mxu0 %v428
        %v647 = vpop.f32.mrb[0].mxu0
        %v648 = vadd.f32 %v356, %v647
        %v649 = vpop.f32.mrb[0].mxu0
        %v650 = vadd.f32 %v360, %v649
        %v651 = vpop.f32.mrb[0].mxu0
        %v652 = vadd.f32 %v356, %v651
        %v653 = vpop.f32.mrb[0].mxu0
        %v654 = vadd.f32 %v360, %v653
        %655 = vdwg.mxu0
        %v656 = vmax.f32 %v465, 0.0
        %v657 = vmax.f32 %v467, 0.0
        %v658 = vmax.f32 %v578, 0.0
        %v659 = vmax.f32 %v580, 0.0
        %v660 = vmax.f32 %v469, 0.0
        %v661 = vmax.f32 %v471, 0.0
        %v662 = vmax.f32 %v582, 0.0
        %v663 = vmax.f32 %v584, 0.0
        %v664 = vmax.f32 %v475, 0.0
        %v665 = vmax.f32 %v477, 0.0
        %v666 = vmax.f32 %v588, 0.0
        %v667 = vmax.f32 %v590, 0.0
        %v668 = vmax.f32 %v479, 0.0
        %v669 = vmax.f32 %v481, 0.0
        %v670 = vmax.f32 %v592, 0.0
        %v671 = vmax.f32 %v594, 0.0
        %v672 = vmax.f32 %v485, 0.0
        %v673 = vmax.f32 %v487, 0.0
        %v674 = vmax.f32 %v598, 0.0
        %v675 = vmax.f32 %v600, 0.0
        %v676 = vmax.f32 %v489, 0.0
        %v677 = vmax.f32 %v491, 0.0
        %v678 = vmax.f32 %v602, 0.0
        %v679 = vmax.f32 %v604, 0.0
        %v680 = vmax.f32 %v495, 0.0
        %v681 = vmax.f32 %v497, 0.0
        %v682 = vmax.f32 %v608, 0.0
        %v683 = vmax.f32 %v610, 0.0
        %v684 = vmax.f32 %v499, 0.0
        %v685 = vmax.f32 %v501, 0.0
        %v686 = vmax.f32 %v612, 0.0
        %v687 = vmax.f32 %v614, 0.0
        %v688 = vmax.f32 %v505, 0.0
        %v689 = vmax.f32 %v507, 0.0
        %v690 = vmax.f32 %v618, 0.0
        %v691 = vmax.f32 %v620, 0.0
        %v692 = vmax.f32 %v509, 0.0
        %v693 = vmax.f32 %v511, 0.0
        %v694 = vmax.f32 %v622, 0.0
        %v695 = vmax.f32 %v624, 0.0
        %v696 = vmax.f32 %v515, 0.0
        %v697 = vmax.f32 %v517, 0.0
        %v698 = vmax.f32 %v628, 0.0
        %v699 = vmax.f32 %v630, 0.0
        %v700 = vmax.f32 %v519, 0.0
        %v701 = vmax.f32 %v521, 0.0
        %v702 = vmax.f32 %v632, 0.0
        %v703 = vmax.f32 %v634, 0.0
        %v704 = vmax.f32 %v525, 0.0
        %v705 = vmax.f32 %v527, 0.0
        %v706 = vmax.f32 %v638, 0.0
        %v707 = vmax.f32 %v640, 0.0
        %v708 = vmax.f32 %v529, 0.0
        %v709 = vmax.f32 %v531, 0.0
        %v710 = vmax.f32 %v642, 0.0
        %v711 = vmax.f32 %v644, 0.0
        %v712 = vmax.f32 %v535, 0.0
        %v713 = vmax.f32 %v537, 0.0
        %v714 = vmax.f32 %v648, 0.0
        %v715 = vmax.f32 %v650, 0.0
        %v716 = vmax.f32 %v539, 0.0
        %v717 = vmax.f32 %v541, 0.0
        %v718 = vmax.f32 %v652, 0.0
        %v719 = vmax.f32 %v654, 0.0
        %v720 = vpack.c.bf16 %v660, %v656
        %v721 = vpack.c.bf16 %v661, %v657
        %v722 = vpack.c.bf16 %v662, %v658
        %v723 = vpack.c.bf16 %v663, %v659
        %v724 = vpack.c.bf16 %v668, %v664
        %v725 = vpack.c.bf16 %v669, %v665
        %v726 = vpack.c.bf16 %v670, %v666
        %v727 = vpack.c.bf16 %v671, %v667
        %v728 = vpack.c.bf16 %v676, %v672
        %v729 = vpack.c.bf16 %v677, %v673
        %v730 = vpack.c.bf16 %v678, %v674
        %v731 = vpack.c.bf16 %v679, %v675
        %v732 = vpack.c.bf16 %v684, %v680
        %v733 = vpack.c.bf16 %v685, %v681
        %v734 = vpack.c.bf16 %v686, %v682
        %v735 = vpack.c.bf16 %v687, %v683
        %v736 = vpack.c.bf16 %v692, %v688
        %v737 = vpack.c.bf16 %v693, %v689
        %v738 = vpack.c.bf16 %v694, %v690
        %v739 = vpack.c.bf16 %v695, %v691
        %v740 = vpack.c.bf16 %v700, %v696
        %v741 = vpack.c.bf16 %v701, %v697
        %v742 = vpack.c.bf16 %v702, %v698
        %v743 = vpack.c.bf16 %v703, %v699
        %v744 = vpack.c.bf16 %v708, %v704
        %v745 = vpack.c.bf16 %v709, %v705
        %v746 = vpack.c.bf16 %v710, %v706
        %v747 = vpack.c.bf16 %v711, %v707
        %v748 = vpack.c.bf16 %v716, %v712
        %v749 = vpack.c.bf16 %v717, %v713
        %v750 = vpack.c.bf16 %v718, %v714
        %v751 = vpack.c.bf16 %v719, %v715
        %v752 = vld [vmem:[#allocation2] sm:$0xff]
        %v753 = vld [vmem:[#allocation2 + $0x8] sm:$0xff]
        %v754 = vld [vmem:[#allocation2 + $0x10] sm:$0xff]
        %v755 = vld [vmem:[#allocation2 + $0x18] sm:$0xff]
        %v756 = vld [vmem:[#allocation2 + $0x20] sm:$0xff]
        %v757 = vld [vmem:[#allocation2 + $0x28] sm:$0xff]
        %v758 = vld [vmem:[#allocation2 + $0x30] sm:$0xff]
        %v759 = vld [vmem:[#allocation2 + $0x38] sm:$0xff]
        %v760 = vld [vmem:[#allocation2 + $0x40] sm:$0xff]
        %v761 = vld [vmem:[#allocation2 + $0x48] sm:$0xff]
        %v762 = vld [vmem:[#allocation2 + $0x50] sm:$0xff]
        %v763 = vld [vmem:[#allocation2 + $0x58] sm:$0xff]
        %v764 = vld [vmem:[#allocation2 + $0x60] sm:$0xff]
        %v765 = vld [vmem:[#allocation2 + $0x68] sm:$0xff]
        %v766 = vld [vmem:[#allocation2 + $0x70] sm:$0xff]
        %v767 = vld [vmem:[#allocation2 + $0x78] sm:$0xff]
        %v768 = vld [vmem:[#allocation2 + $0x80] sm:$0xff]
        %v769 = vld [vmem:[#allocation2 + $0x88] sm:$0xff]
        %v770 = vld [vmem:[#allocation2 + $0x90] sm:$0xff]
        %v771 = vld [vmem:[#allocation2 + $0x98] sm:$0xff]
        %v772 = vld [vmem:[#allocation2 + $0xa0] sm:$0xff]
        %v773 = vld [vmem:[#allocation2 + $0xa8] sm:$0xff]
        %v774 = vld [vmem:[#allocation2 + $0xb0] sm:$0xff]
        %v775 = vld [vmem:[#allocation2 + $0xb8] sm:$0xff]
        %v776 = vld [vmem:[#allocation2 + $0xc0] sm:$0xff]
        %v777 = vld [vmem:[#allocation2 + $0xc8] sm:$0xff]
        %v778 = vld [vmem:[#allocation2 + $0xd0] sm:$0xff]
        %v779 = vld [vmem:[#allocation2 + $0xd8] sm:$0xff]
        %v780 = vld [vmem:[#allocation2 + $0xe0] sm:$0xff]
        %v781 = vld [vmem:[#allocation2 + $0xe8] sm:$0xff]
        %v782 = vld [vmem:[#allocation2 + $0xf0] sm:$0xff]
        %v783 = vld [vmem:[#allocation2 + $0xf8] sm:$0xff]
        %v784 = vld [vmem:[#allocation2 + $0x100] sm:$0xff]
        %v785 = vld [vmem:[#allocation2 + $0x108] sm:$0xff]
        %v786 = vld [vmem:[#allocation2 + $0x110] sm:$0xff]
        %v787 = vld [vmem:[#allocation2 + $0x118] sm:$0xff]
        %v788 = vld [vmem:[#allocation2 + $0x120] sm:$0xff]
        %v789 = vld [vmem:[#allocation2 + $0x128] sm:$0xff]
        %v790 = vld [vmem:[#allocation2 + $0x130] sm:$0xff]
        %v791 = vld [vmem:[#allocation2 + $0x138] sm:$0xff]
        %v792 = vld [vmem:[#allocation2 + $0x140] sm:$0xff]
        %v793 = vld [vmem:[#allocation2 + $0x148] sm:$0xff]
        %v794 = vld [vmem:[#allocation2 + $0x150] sm:$0xff]
        %v795 = vld [vmem:[#allocation2 + $0x158] sm:$0xff]
        %v796 = vld [vmem:[#allocation2 + $0x160] sm:$0xff]
        %v797 = vld [vmem:[#allocation2 + $0x168] sm:$0xff]
        %v798 = vld [vmem:[#allocation2 + $0x170] sm:$0xff]
        %v799 = vld [vmem:[#allocation2 + $0x178] sm:$0xff]
        %v800 = vld [vmem:[#allocation2 + $0x180] sm:$0xff]
        %v801 = vld [vmem:[#allocation2 + $0x188] sm:$0xff]
        %v802 = vld [vmem:[#allocation2 + $0x190] sm:$0xff]
        %v803 = vld [vmem:[#allocation2 + $0x198] sm:$0xff]
        %v804 = vld [vmem:[#allocation2 + $0x1a0] sm:$0xff]
        %v805 = vld [vmem:[#allocation2 + $0x1a8] sm:$0xff]
        %v806 = vld [vmem:[#allocation2 + $0x1b0] sm:$0xff]
        %v807 = vld [vmem:[#allocation2 + $0x1b8] sm:$0xff]
        %v808 = vld [vmem:[#allocation2 + $0x1c0] sm:$0xff]
        %v809 = vld [vmem:[#allocation2 + $0x1c8] sm:$0xff]
        %v810 = vld [vmem:[#allocation2 + $0x1d0] sm:$0xff]
        %v811 = vld [vmem:[#allocation2 + $0x1d8] sm:$0xff]
        %v812 = vld [vmem:[#allocation2 + $0x1e0] sm:$0xff]
        %v813 = vld [vmem:[#allocation2 + $0x1e8] sm:$0xff]
        %v814 = vld [vmem:[#allocation2 + $0x1f0] sm:$0xff]
        %v815 = vld [vmem:[#allocation2 + $0x1f8] sm:$0xff]
        %v816 = vld [vmem:[#allocation4 + $0x4] sm:$0x3]
        %v818 = vlaneseq
        %v819 = vshrl.u32 %v818, 7
        %v820 = vsub.s32 0, %v819
        %v821 = vrot.slane %v816, %v820
        %v822 = vlaneseq
        %v823 = vshrl.u32 %v822, 7
        %v824 = vsub.s32 1, %v823
        %v825 = vrot.slane %v816, %v824
        %v892 = vunpack.c.l.b16 %v752
        %v893 = vunpack.c.h.b16 %v752
        %v894 = vunpack.c.l.b16 %v753
        %v895 = vunpack.c.h.b16 %v753
        %v896 = vunpack.c.l.b16 %v754
        %v897 = vunpack.c.h.b16 %v754
        %v898 = vunpack.c.l.b16 %v755
        %v899 = vunpack.c.h.b16 %v755
        %v900 = vunpack.c.l.b16 %v756
        %v901 = vunpack.c.h.b16 %v756
        %v902 = vunpack.c.l.b16 %v757
        %v903 = vunpack.c.h.b16 %v757
        %v904 = vunpack.c.l.b16 %v758
        %v905 = vunpack.c.h.b16 %v758
        %v906 = vunpack.c.l.b16 %v759
        %v907 = vunpack.c.h.b16 %v759
        %v908 = vunpack.c.l.b16 %v760
        %v909 = vunpack.c.h.b16 %v760
        %v910 = vunpack.c.l.b16 %v761
        %v911 = vunpack.c.h.b16 %v761
        %v912 = vunpack.c.l.b16 %v762
        %v913 = vunpack.c.h.b16 %v762
        %v914 = vunpack.c.l.b16 %v763
        %v915 = vunpack.c.h.b16 %v763
        %v916 = vunpack.c.l.b16 %v764
        %v917 = vunpack.c.h.b16 %v764
        %v918 = vunpack.c.l.b16 %v765
        %v919 = vunpack.c.h.b16 %v765
        %v920 = vunpack.c.l.b16 %v766
        %v921 = vunpack.c.h.b16 %v766
        %v922 = vunpack.c.l.b16 %v767
        %v923 = vunpack.c.h.b16 %v767
        %v924 = vunpack.c.l.b16 %v768
        %v925 = vunpack.c.h.b16 %v768
        %v926 = vunpack.c.l.b16 %v769
        %v927 = vunpack.c.h.b16 %v769
        %v928 = vunpack.c.l.b16 %v770
        %v929 = vunpack.c.h.b16 %v770
        %v930 = vunpack.c.l.b16 %v771
        %v931 = vunpack.c.h.b16 %v771
        %v932 = vunpack.c.l.b16 %v772
        %v933 = vunpack.c.h.b16 %v772
        %v934 = vunpack.c.l.b16 %v773
        %v935 = vunpack.c.h.b16 %v773
        %v936 = vunpack.c.l.b16 %v774
        %v937 = vunpack.c.h.b16 %v774
        %v938 = vunpack.c.l.b16 %v775
        %v939 = vunpack.c.h.b16 %v775
        %v940 = vunpack.c.l.b16 %v776
        %v941 = vunpack.c.h.b16 %v776
        %v942 = vunpack.c.l.b16 %v777
        %v943 = vunpack.c.h.b16 %v777
        %v944 = vunpack.c.l.b16 %v778
        %v945 = vunpack.c.h.b16 %v778
        %v946 = vunpack.c.l.b16 %v779
        %v947 = vunpack.c.h.b16 %v779
        %v948 = vunpack.c.l.b16 %v780
        %v949 = vunpack.c.h.b16 %v780
        %v950 = vunpack.c.l.b16 %v781
        %v951 = vunpack.c.h.b16 %v781
        %v952 = vunpack.c.l.b16 %v782
        %v953 = vunpack.c.h.b16 %v782
        %v954 = vunpack.c.l.b16 %v783
        %v955 = vunpack.c.h.b16 %v783
        %v956 = vunpack.c.l.b16 %v784
        %v957 = vunpack.c.h.b16 %v784
        %v958 = vunpack.c.l.b16 %v785
        %v959 = vunpack.c.h.b16 %v785
        %v960 = vunpack.c.l.b16 %v786
        %v961 = vunpack.c.h.b16 %v786
        %v962 = vunpack.c.l.b16 %v787
        %v963 = vunpack.c.h.b16 %v787
        %v964 = vunpack.c.l.b16 %v788
        %v965 = vunpack.c.h.b16 %v788
        %v966 = vunpack.c.l.b16 %v789
        %v967 = vunpack.c.h.b16 %v789
        %v968 = vunpack.c.l.b16 %v790
        %v969 = vunpack.c.h.b16 %v790
        %v970 = vunpack.c.l.b16 %v791
        %v971 = vunpack.c.h.b16 %v791
        %v972 = vunpack.c.l.b16 %v792
        %v973 = vunpack.c.h.b16 %v792
        %v974 = vunpack.c.l.b16 %v793
        %v975 = vunpack.c.h.b16 %v793
        %v976 = vunpack.c.l.b16 %v794
        %v977 = vunpack.c.h.b16 %v794
        %v978 = vunpack.c.l.b16 %v795
        %v979 = vunpack.c.h.b16 %v795
        %v980 = vunpack.c.l.b16 %v796
        %v981 = vunpack.c.h.b16 %v796
        %v982 = vunpack.c.l.b16 %v797
        %v983 = vunpack.c.h.b16 %v797
        %v984 = vunpack.c.l.b16 %v798
        %v985 = vunpack.c.h.b16 %v798
        %v986 = vunpack.c.l.b16 %v799
        %v987 = vunpack.c.h.b16 %v799
        %v988 = vunpack.c.l.b16 %v800
        %v989 = vunpack.c.h.b16 %v800
        %v990 = vunpack.c.l.b16 %v801
        %v991 = vunpack.c.h.b16 %v801
        %v992 = vunpack.c.l.b16 %v802
        %v993 = vunpack.c.h.b16 %v802
        %v994 = vunpack.c.l.b16 %v803
        %v995 = vunpack.c.h.b16 %v803
        %v996 = vunpack.c.l.b16 %v804
        %v997 = vunpack.c.h.b16 %v804
        %v998 = vunpack.c.l.b16 %v805
        %v999 = vunpack.c.h.b16 %v805
        %v1000 = vunpack.c.l.b16 %v806
        %v1001 = vunpack.c.h.b16 %v806
        %v1002 = vunpack.c.l.b16 %v807
        %v1003 = vunpack.c.h.b16 %v807
        %v1004 = vunpack.c.l.b16 %v808
        %v1005 = vunpack.c.h.b16 %v808
        %v1006 = vunpack.c.l.b16 %v809
        %v1007 = vunpack.c.h.b16 %v809
        %v1008 = vunpack.c.l.b16 %v810
        %v1009 = vunpack.c.h.b16 %v810
        %v1010 = vunpack.c.l.b16 %v811
        %v1011 = vunpack.c.h.b16 %v811
        %v1012 = vunpack.c.l.b16 %v812
        %v1013 = vunpack.c.h.b16 %v812
        %v1014 = vunpack.c.l.b16 %v813
        %v1015 = vunpack.c.h.b16 %v813
        %v1016 = vunpack.c.l.b16 %v814
        %v1017 = vunpack.c.h.b16 %v814
        %v1018 = vunpack.c.l.b16 %v815
        %v1019 = vunpack.c.h.b16 %v815
        %v1020 = vpack.c.b16 %v894, %v892
        %v1021 = vpack.c.b16 %v895, %v893
        %v1022 = vpack.c.b16 %v898, %v896
        %v1023 = vpack.c.b16 %v899, %v897
        %v1024 = vpack.c.b16 %v902, %v900
        %v1025 = vpack.c.b16 %v903, %v901
        %v1026 = vpack.c.b16 %v906, %v904
        %v1027 = vpack.c.b16 %v907, %v905
        %v1028 = vpack.c.b16 %v910, %v908
        %v1029 = vpack.c.b16 %v911, %v909
        %v1030 = vpack.c.b16 %v914, %v912
        %v1031 = vpack.c.b16 %v915, %v913
        %v1032 = vpack.c.b16 %v918, %v916
        %v1033 = vpack.c.b16 %v919, %v917
        %v1034 = vpack.c.b16 %v922, %v920
        %v1035 = vpack.c.b16 %v923, %v921
        %v1036 = vpack.c.b16 %v926, %v924
        %v1037 = vpack.c.b16 %v927, %v925
        %v1038 = vpack.c.b16 %v930, %v928
        %v1039 = vpack.c.b16 %v931, %v929
        %v1040 = vpack.c.b16 %v934, %v932
        %v1041 = vpack.c.b16 %v935, %v933
        %v1042 = vpack.c.b16 %v938, %v936
        %v1043 = vpack.c.b16 %v939, %v937
        %v1044 = vpack.c.b16 %v942, %v940
        %v1045 = vpack.c.b16 %v943, %v941
        %v1046 = vpack.c.b16 %v946, %v944
        %v1047 = vpack.c.b16 %v947, %v945
        %v1048 = vpack.c.b16 %v950, %v948
        %v1049 = vpack.c.b16 %v951, %v949
        %v1050 = vpack.c.b16 %v954, %v952
        %v1051 = vpack.c.b16 %v955, %v953
        %v1052 = vpack.c.b16 %v958, %v956
        %v1053 = vpack.c.b16 %v959, %v957
        %v1054 = vpack.c.b16 %v962, %v960
        %v1055 = vpack.c.b16 %v963, %v961
        %v1056 = vpack.c.b16 %v966, %v964
        %v1057 = vpack.c.b16 %v967, %v965
        %v1058 = vpack.c.b16 %v970, %v968
        %v1059 = vpack.c.b16 %v971, %v969
        %v1060 = vpack.c.b16 %v974, %v972
        %v1061 = vpack.c.b16 %v975, %v973
        %v1062 = vpack.c.b16 %v978, %v976
        %v1063 = vpack.c.b16 %v979, %v977
        %v1064 = vpack.c.b16 %v982, %v980
        %v1065 = vpack.c.b16 %v983, %v981
        %v1066 = vpack.c.b16 %v986, %v984
        %v1067 = vpack.c.b16 %v987, %v985
        %v1068 = vpack.c.b16 %v990, %v988
        %v1069 = vpack.c.b16 %v991, %v989
        %v1070 = vpack.c.b16 %v994, %v992
        %v1071 = vpack.c.b16 %v995, %v993
        %v1072 = vpack.c.b16 %v998, %v996
        %v1073 = vpack.c.b16 %v999, %v997
        %v1074 = vpack.c.b16 %v1002, %v1000
        %v1075 = vpack.c.b16 %v1003, %v1001
        %v1076 = vpack.c.b16 %v1006, %v1004
        %v1077 = vpack.c.b16 %v1007, %v1005
        %v1078 = vpack.c.b16 %v1010, %v1008
        %v1079 = vpack.c.b16 %v1011, %v1009
        %v1080 = vpack.c.b16 %v1014, %v1012
        %v1081 = vpack.c.b16 %v1015, %v1013
        %v1082 = vpack.c.b16 %v1018, %v1016
        %v1083 = vpack.c.b16 %v1019, %v1017
        %1148 = vmatprep.subr.bf16.mxu0 %v1021
        %1149 = vmatpush1.bf16.msra.mxu0 %v1020
        %1150 = vmatprep.subr.bf16.mxu0 %v1023
        %1151 = vmatpush1.bf16.msra.mxu0 %v1022
        %1152 = vmatprep.subr.bf16.mxu0 %v1025
        %1153 = vmatpush1.bf16.msra.mxu0 %v1024
        %1154 = vmatprep.subr.bf16.mxu0 %v1027
        %1155 = vmatpush1.bf16.msra.mxu0 %v1026
        %1156 = vmatprep.subr.bf16.mxu0 %v1029
        %1157 = vmatpush1.bf16.msra.mxu0 %v1028
        %1158 = vmatprep.subr.bf16.mxu0 %v1031
        %1159 = vmatpush1.bf16.msra.mxu0 %v1030
        %1160 = vmatprep.subr.bf16.mxu0 %v1033
        %1161 = vmatpush1.bf16.msra.mxu0 %v1032
        %1162 = vmatprep.subr.bf16.mxu0 %v1035
        %1163 = vmatpush1.bf16.msra.mxu0 %v1034
        %1164 = vmatprep.subr.bf16.mxu0 %v1037
        %1165 = vmatpush1.bf16.msra.mxu0 %v1036
        %1166 = vmatprep.subr.bf16.mxu0 %v1039
        %1167 = vmatpush1.bf16.msra.mxu0 %v1038
        %1168 = vmatprep.subr.bf16.mxu0 %v1041
        %1169 = vmatpush1.bf16.msra.mxu0 %v1040
        %1170 = vmatprep.subr.bf16.mxu0 %v1043
        %1171 = vmatpush1.bf16.msra.mxu0 %v1042
        %1172 = vmatprep.subr.bf16.mxu0 %v1045
        %1173 = vmatpush1.bf16.msra.mxu0 %v1044
        %1174 = vmatprep.subr.bf16.mxu0 %v1047
        %1175 = vmatpush1.bf16.msra.mxu0 %v1046
        %1176 = vmatprep.subr.bf16.mxu0 %v1049
        %1177 = vmatpush1.bf16.msra.mxu0 %v1048
        %1178 = vmatprep.subr.bf16.mxu0 %v1051
        %1179 = vmatpush1.bf16.msra.mxu0 %v1050
        %1180 = vmatprep.mubr.bf16.mxu0 %v721
        %1181 = vmatmul.mubr.bf16.gmra.mrb[0].mxu0 %v720
        %v1182 = vpop.f32.mrb[0].mxu0
        %v1183 = vadd.f32 %v821, %v1182
        %v1184 = vpop.f32.mrb[0].mxu0
        %v1185 = vadd.f32 %v825, %v1184
        %v1186 = vpop.f32.mrb[0].mxu0
        %v1187 = vadd.f32 %v821, %v1186
        %v1188 = vpop.f32.mrb[0].mxu0
        %v1189 = vadd.f32 %v825, %v1188
        %1190 = vmatprep.mubr.bf16.mxu0 %v725
        %1191 = vmatmul.mubr.bf16.gmra.mrb[0].mxu0 %v724
        %v1192 = vpop.f32.mrb[0].mxu0
        %v1193 = vadd.f32 %v821, %v1192
        %v1194 = vpop.f32.mrb[0].mxu0
        %v1195 = vadd.f32 %v825, %v1194
        %v1196 = vpop.f32.mrb[0].mxu0
        %v1197 = vadd.f32 %v821, %v1196
        %v1198 = vpop.f32.mrb[0].mxu0
        %v1199 = vadd.f32 %v825, %v1198
        %1200 = vmatprep.mubr.bf16.mxu0 %v729
        %1201 = vmatmul.mubr.bf16.gmra.mrb[0].mxu0 %v728
        %v1202 = vpop.f32.mrb[0].mxu0
        %v1203 = vadd.f32 %v821, %v1202
        %v1204 = vpop.f32.mrb[0].mxu0
        %v1205 = vadd.f32 %v825, %v1204
        %v1206 = vpop.f32.mrb[0].mxu0
        %v1207 = vadd.f32 %v821, %v1206
        %v1208 = vpop.f32.mrb[0].mxu0
        %v1209 = vadd.f32 %v825, %v1208
        %1210 = vmatprep.mubr.bf16.mxu0 %v733
        %1211 = vmatmul.mubr.bf16.gmra.mrb[0].mxu0 %v732
        %v1212 = vpop.f32.mrb[0].mxu0
        %v1213 = vadd.f32 %v821, %v1212
        %v1214 = vpop.f32.mrb[0].mxu0
        %v1215 = vadd.f32 %v825, %v1214
        %v1216 = vpop.f32.mrb[0].mxu0
        %v1217 = vadd.f32 %v821, %v1216
        %v1218 = vpop.f32.mrb[0].mxu0
        %v1219 = vadd.f32 %v825, %v1218
        %1220 = vmatprep.mubr.bf16.mxu0 %v737
        %1221 = vmatmul.mubr.bf16.gmra.mrb[0].mxu0 %v736
        %v1222 = vpop.f32.mrb[0].mxu0
        %v1223 = vadd.f32 %v821, %v1222
        %v1224 = vpop.f32.mrb[0].mxu0
        %v1225 = vadd.f32 %v825, %v1224
        %v1226 = vpop.f32.mrb[0].mxu0
        %v1227 = vadd.f32 %v821, %v1226
        %v1228 = vpop.f32.mrb[0].mxu0
        %v1229 = vadd.f32 %v825, %v1228
        %1230 = vmatprep.mubr.bf16.mxu0 %v741
        %1231 = vmatmul.mubr.bf16.gmra.mrb[0].mxu0 %v740
        %v1232 = vpop.f32.mrb[0].mxu0
        %v1233 = vadd.f32 %v821, %v1232
        %v1234 = vpop.f32.mrb[0].mxu0
        %v1235 = vadd.f32 %v825, %v1234
        %v1236 = vpop.f32.mrb[0].mxu0
        %v1237 = vadd.f32 %v821, %v1236
        %v1238 = vpop.f32.mrb[0].mxu0
        %v1239 = vadd.f32 %v825, %v1238
        %1240 = vmatprep.mubr.bf16.mxu0 %v745
        %1241 = vmatmul.mubr.bf16.gmra.mrb[0].mxu0 %v744
        %v1242 = vpop.f32.mrb[0].mxu0
        %v1243 = vadd.f32 %v821, %v1242
        %v1244 = vpop.f32.mrb[0].mxu0
        %v1245 = vadd.f32 %v825, %v1244
        %v1246 = vpop.f32.mrb[0].mxu0
        %v1247 = vadd.f32 %v821, %v1246
        %v1248 = vpop.f32.mrb[0].mxu0
        %v1249 = vadd.f32 %v825, %v1248
        %1250 = vmatprep.mubr.bf16.mxu0 %v749
        %1251 = vmatmul.mubr.bf16.gmra.mrb[0].mxu0 %v748
        %v1252 = vpop.f32.mrb[0].mxu0
        %v1253 = vadd.f32 %v821, %v1252
        %v1254 = vpop.f32.mrb[0].mxu0
        %v1255 = vadd.f32 %v825, %v1254
        %v1256 = vpop.f32.mrb[0].mxu0
        %v1257 = vadd.f32 %v821, %v1256
        %v1258 = vpop.f32.mrb[0].mxu0
        %v1259 = vadd.f32 %v825, %v1258
        %1260 = vdwg.mxu0
        %1261 = vmatprep.subr.bf16.mxu0 %v1053
        %1262 = vmatpush1.bf16.msra.mxu0 %v1052
        %1263 = vmatprep.subr.bf16.mxu0 %v1055
        %1264 = vmatpush1.bf16.msra.mxu0 %v1054
        %1265 = vmatprep.subr.bf16.mxu0 %v1057
        %1266 = vmatpush1.bf16.msra.mxu0 %v1056
        %1267 = vmatprep.subr.bf16.mxu0 %v1059
        %1268 = vmatpush1.bf16.msra.mxu0 %v1058
        %1269 = vmatprep.subr.bf16.mxu0 %v1061
        %1270 = vmatpush1.bf16.msra.mxu0 %v1060
        %1271 = vmatprep.subr.bf16.mxu0 %v1063
        %1272 = vmatpush1.bf16.msra.mxu0 %v1062
        %1273 = vmatprep.subr.bf16.mxu0 %v1065
        %1274 = vmatpush1.bf16.msra.mxu0 %v1064
        %1275 = vmatprep.subr.bf16.mxu0 %v1067
        %1276 = vmatpush1.bf16.msra.mxu0 %v1066
        %1277 = vmatprep.subr.bf16.mxu0 %v1069
        %1278 = vmatpush1.bf16.msra.mxu0 %v1068
        %1279 = vmatprep.subr.bf16.mxu0 %v1071
        %1280 = vmatpush1.bf16.msra.mxu0 %v1070
        %1281 = vmatprep.subr.bf16.mxu0 %v1073
        %1282 = vmatpush1.bf16.msra.mxu0 %v1072
        %1283 = vmatprep.subr.bf16.mxu0 %v1075
        %1284 = vmatpush1.bf16.msra.mxu0 %v1074
        %1285 = vmatprep.subr.bf16.mxu0 %v1077
        %1286 = vmatpush1.bf16.msra.mxu0 %v1076
        %1287 = vmatprep.subr.bf16.mxu0 %v1079
        %1288 = vmatpush1.bf16.msra.mxu0 %v1078
        %1289 = vmatprep.subr.bf16.mxu0 %v1081
        %1290 = vmatpush1.bf16.msra.mxu0 %v1080
        %1291 = vmatprep.subr.bf16.mxu0 %v1083
        %1292 = vmatpush1.bf16.msra.mxu0 %v1082
        %1293 = vmatprep.mubr.bf16.mxu0 %v723
        %1294 = vmatmul.mubr.bf16.gmra.mrb[0].mxu0 %v722
        %v1295 = vpop.f32.mrb[0].mxu0
        %v1296 = vadd.f32 %v1183, %v1295
        %v1297 = vpop.f32.mrb[0].mxu0
        %v1298 = vadd.f32 %v1185, %v1297
        %v1299 = vpop.f32.mrb[0].mxu0
        %v1300 = vadd.f32 %v1187, %v1299
        %v1301 = vpop.f32.mrb[0].mxu0
        %v1302 = vadd.f32 %v1189, %v1301
        %1303 = vmatprep.mubr.bf16.mxu0 %v727
        %1304 = vmatmul.mubr.bf16.gmra.mrb[0].mxu0 %v726
        %v1305 = vpop.f32.mrb[0].mxu0
        %v1306 = vadd.f32 %v1193, %v1305
        %v1307 = vpop.f32.mrb[0].mxu0
        %v1308 = vadd.f32 %v1195, %v1307
        %v1309 = vpop.f32.mrb[0].mxu0
        %v1310 = vadd.f32 %v1197, %v1309
        %v1311 = vpop.f32.mrb[0].mxu0
        %v1312 = vadd.f32 %v1199, %v1311
        %1313 = vmatprep.mubr.bf16.mxu0 %v731
        %1314 = vmatmul.mubr.bf16.gmra.mrb[0].mxu0 %v730
        %v1315 = vpop.f32.mrb[0].mxu0
        %v1316 = vadd.f32 %v1203, %v1315
        %v1317 = vpop.f32.mrb[0].mxu0
        %v1318 = vadd.f32 %v1205, %v1317
        %v1319 = vpop.f32.mrb[0].mxu0
        %v1320 = vadd.f32 %v1207, %v1319
        %v1321 = vpop.f32.mrb[0].mxu0
        %v1322 = vadd.f32 %v1209, %v1321
        %1323 = vmatprep.mubr.bf16.mxu0 %v735
        %1324 = vmatmul.mubr.bf16.gmra.mrb[0].mxu0 %v734
        %v1325 = vpop.f32.mrb[0].mxu0
        %v1326 = vadd.f32 %v1213, %v1325
        %v1327 = vpop.f32.mrb[0].mxu0
        %v1328 = vadd.f32 %v1215, %v1327
        %v1329 = vpop.f32.mrb[0].mxu0
        %v1330 = vadd.f32 %v1217, %v1329
        %v1331 = vpop.f32.mrb[0].mxu0
        %v1332 = vadd.f32 %v1219, %v1331
        %1333 = vmatprep.mubr.bf16.mxu0 %v739
        %1334 = vmatmul.mubr.bf16.gmra.mrb[0].mxu0 %v738
        %v1335 = vpop.f32.mrb[0].mxu0
        %v1336 = vadd.f32 %v1223, %v1335
        %v1337 = vpop.f32.mrb[0].mxu0
        %v1338 = vadd.f32 %v1225, %v1337
        %v1339 = vpop.f32.mrb[0].mxu0
        %v1340 = vadd.f32 %v1227, %v1339
        %v1341 = vpop.f32.mrb[0].mxu0
        %v1342 = vadd.f32 %v1229, %v1341
        %1343 = vmatprep.mubr.bf16.mxu0 %v743
        %1344 = vmatmul.mubr.bf16.gmra.mrb[0].mxu0 %v742
        %v1345 = vpop.f32.mrb[0].mxu0
        %v1346 = vadd.f32 %v1233, %v1345
        %v1347 = vpop.f32.mrb[0].mxu0
        %v1348 = vadd.f32 %v1235, %v1347
        %v1349 = vpop.f32.mrb[0].mxu0
        %v1350 = vadd.f32 %v1237, %v1349
        %v1351 = vpop.f32.mrb[0].mxu0
        %v1352 = vadd.f32 %v1239, %v1351
        %1353 = vmatprep.mubr.bf16.mxu0 %v747
        %1354 = vmatmul.mubr.bf16.gmra.mrb[0].mxu0 %v746
        %v1355 = vpop.f32.mrb[0].mxu0
        %v1356 = vadd.f32 %v1243, %v1355
        %v1357 = vpop.f32.mrb[0].mxu0
        %v1358 = vadd.f32 %v1245, %v1357
        %v1359 = vpop.f32.mrb[0].mxu0
        %v1360 = vadd.f32 %v1247, %v1359
        %v1361 = vpop.f32.mrb[0].mxu0
        %v1362 = vadd.f32 %v1249, %v1361
        %1363 = vmatprep.mubr.bf16.mxu0 %v751
        %1364 = vmatmul.mubr.bf16.gmra.mrb[0].mxu0 %v750
        %v1365 = vpop.f32.mrb[0].mxu0
        %v1366 = vadd.f32 %v1253, %v1365
        %v1367 = vpop.f32.mrb[0].mxu0
        %v1368 = vadd.f32 %v1255, %v1367
        %v1369 = vpop.f32.mrb[0].mxu0
        %v1370 = vadd.f32 %v1257, %v1369
        %v1371 = vpop.f32.mrb[0].mxu0
        %v1372 = vadd.f32 %v1259, %v1371
        %1373 = vdwg.mxu0
        %v1374 = vmax.f32 %v1296, 0.0
        %v1375 = vmax.f32 %v1298, 0.0
        %v1376 = vmax.f32 %v1300, 0.0
        %v1377 = vmax.f32 %v1302, 0.0
        %v1378 = vmax.f32 %v1306, 0.0
        %v1379 = vmax.f32 %v1308, 0.0
        %v1380 = vmax.f32 %v1310, 0.0
        %v1381 = vmax.f32 %v1312, 0.0
        %v1382 = vmax.f32 %v1316, 0.0
        %v1383 = vmax.f32 %v1318, 0.0
        %v1384 = vmax.f32 %v1320, 0.0
        %v1385 = vmax.f32 %v1322, 0.0
        %v1386 = vmax.f32 %v1326, 0.0
        %v1387 = vmax.f32 %v1328, 0.0
        %v1388 = vmax.f32 %v1330, 0.0
        %v1389 = vmax.f32 %v1332, 0.0
        %v1390 = vmax.f32 %v1336, 0.0
        %v1391 = vmax.f32 %v1338, 0.0
        %v1392 = vmax.f32 %v1340, 0.0
        %v1393 = vmax.f32 %v1342, 0.0
        %v1394 = vmax.f32 %v1346, 0.0
        %v1395 = vmax.f32 %v1348, 0.0
        %v1396 = vmax.f32 %v1350, 0.0
        %v1397 = vmax.f32 %v1352, 0.0
        %v1398 = vmax.f32 %v1356, 0.0
        %v1399 = vmax.f32 %v1358, 0.0
        %v1400 = vmax.f32 %v1360, 0.0
        %v1401 = vmax.f32 %v1362, 0.0
        %v1402 = vmax.f32 %v1366, 0.0
        %v1403 = vmax.f32 %v1368, 0.0
        %v1404 = vmax.f32 %v1370, 0.0
        %v1405 = vmax.f32 %v1372, 0.0
        %v1406 = vpack.c.bf16 %v1376, %v1374
        %v1407 = vpack.c.bf16 %v1377, %v1375
        %v1408 = vpack.c.bf16 %v1380, %v1378
        %v1409 = vpack.c.bf16 %v1381, %v1379
        %v1410 = vpack.c.bf16 %v1384, %v1382
        %v1411 = vpack.c.bf16 %v1385, %v1383
        %v1412 = vpack.c.bf16 %v1388, %v1386
        %v1413 = vpack.c.bf16 %v1389, %v1387
        %v1414 = vpack.c.bf16 %v1392, %v1390
        %v1415 = vpack.c.bf16 %v1393, %v1391
        %v1416 = vpack.c.bf16 %v1396, %v1394
        %v1417 = vpack.c.bf16 %v1397, %v1395
        %v1418 = vpack.c.bf16 %v1400, %v1398
        %v1419 = vpack.c.bf16 %v1401, %v1399
        %v1420 = vpack.c.bf16 %v1404, %v1402
        %v1421 = vpack.c.bf16 %v1405, %v1403
        %v1422 = vld [vmem:[%s3] sm:$0xf]
        %v1423 = vld [vmem:[%s3 + $0x4] sm:$0xf]
        %v1424 = vld [vmem:[%s3 + $0x8] sm:$0xf]
        %v1425 = vld [vmem:[%s3 + $0xc] sm:$0xf]
        %v1426 = vld [vmem:[%s3 + $0x10] sm:$0xf]
        %v1427 = vld [vmem:[%s3 + $0x14] sm:$0xf]
        %v1428 = vld [vmem:[%s3 + $0x18] sm:$0xf]
        %v1429 = vld [vmem:[%s3 + $0x1c] sm:$0xf]
        %v1430 = vld [vmem:[%s3 + $0x20] sm:$0xf]
        %v1431 = vld [vmem:[%s3 + $0x24] sm:$0xf]
        %v1432 = vld [vmem:[%s3 + $0x28] sm:$0xf]
        %v1433 = vld [vmem:[%s3 + $0x2c] sm:$0xf]
        %v1434 = vld [vmem:[%s3 + $0x30] sm:$0xf]
        %v1435 = vld [vmem:[%s3 + $0x34] sm:$0xf]
        %v1436 = vld [vmem:[%s3 + $0x38] sm:$0xf]
        %v1437 = vld [vmem:[%s3 + $0x3c] sm:$0xf]
        %v1438 = vld [vmem:[%s3 + $0x40] sm:$0xf]
        %v1439 = vld [vmem:[%s3 + $0x44] sm:$0xf]
        %v1440 = vld [vmem:[%s3 + $0x48] sm:$0xf]
        %v1441 = vld [vmem:[%s3 + $0x4c] sm:$0xf]
        %v1442 = vld [vmem:[%s3 + $0x50] sm:$0xf]
        %v1443 = vld [vmem:[%s3 + $0x54] sm:$0xf]
        %v1444 = vld [vmem:[%s3 + $0x58] sm:$0xf]
        %v1445 = vld [vmem:[%s3 + $0x5c] sm:$0xf]
        %v1446 = vld [vmem:[%s3 + $0x60] sm:$0xf]
        %v1447 = vld [vmem:[%s3 + $0x64] sm:$0xf]
        %v1448 = vld [vmem:[%s3 + $0x68] sm:$0xf]
        %v1449 = vld [vmem:[%s3 + $0x6c] sm:$0xf]
        %v1450 = vld [vmem:[%s3 + $0x70] sm:$0xf]
        %v1451 = vld [vmem:[%s3 + $0x74] sm:$0xf]
        %v1452 = vld [vmem:[%s3 + $0x78] sm:$0xf]
        %v1453 = vld [vmem:[%s3 + $0x7c] sm:$0xf]
        %v1454 = vld [vmem:[#allocation4 + $0x6] sm:$0x1]
        %v1456 = vlaneseq
        %v1457 = vshrl.u32 %v1456, 7
        %v1458 = vsub.s32 0, %v1457
        %v1459 = vrot.slane %v1454, %v1458
        %v1493 = vunpack.c.l.b16 %v1422
        %v1494 = vunpack.c.l.b16 %v1423
        %v1495 = vunpack.c.l.b16 %v1424
        %v1496 = vunpack.c.l.b16 %v1425
        %v1497 = vunpack.c.l.b16 %v1426
        %v1498 = vunpack.c.l.b16 %v1427
        %v1499 = vunpack.c.l.b16 %v1428
        %v1500 = vunpack.c.l.b16 %v1429
        %v1501 = vunpack.c.l.b16 %v1430
        %v1502 = vunpack.c.l.b16 %v1431
        %v1503 = vunpack.c.l.b16 %v1432
        %v1504 = vunpack.c.l.b16 %v1433
        %v1505 = vunpack.c.l.b16 %v1434
        %v1506 = vunpack.c.l.b16 %v1435
        %v1507 = vunpack.c.l.b16 %v1436
        %v1508 = vunpack.c.l.b16 %v1437
        %v1509 = vunpack.c.l.b16 %v1438
        %v1510 = vunpack.c.l.b16 %v1439
        %v1511 = vunpack.c.l.b16 %v1440
        %v1512 = vunpack.c.l.b16 %v1441
        %v1513 = vunpack.c.l.b16 %v1442
        %v1514 = vunpack.c.l.b16 %v1443
        %v1515 = vunpack.c.l.b16 %v1444
        %v1516 = vunpack.c.l.b16 %v1445
        %v1517 = vunpack.c.l.b16 %v1446
        %v1518 = vunpack.c.l.b16 %v1447
        %v1519 = vunpack.c.l.b16 %v1448
        %v1520 = vunpack.c.l.b16 %v1449
        %v1521 = vunpack.c.l.b16 %v1450
        %v1522 = vunpack.c.l.b16 %v1451
        %v1523 = vunpack.c.l.b16 %v1452
        %v1524 = vunpack.c.l.b16 %v1453
        %v1525 = vpack.c.b16 %v1494, %v1493
        %v1526 = vpack.c.b16 %v1496, %v1495
        %v1527 = vpack.c.b16 %v1498, %v1497
        %v1528 = vpack.c.b16 %v1500, %v1499
        %v1529 = vpack.c.b16 %v1502, %v1501
        %v1530 = vpack.c.b16 %v1504, %v1503
        %v1531 = vpack.c.b16 %v1506, %v1505
        %v1532 = vpack.c.b16 %v1508, %v1507
        %v1533 = vpack.c.b16 %v1510, %v1509
        %v1534 = vpack.c.b16 %v1512, %v1511
        %v1535 = vpack.c.b16 %v1514, %v1513
        %v1536 = vpack.c.b16 %v1516, %v1515
        %v1537 = vpack.c.b16 %v1518, %v1517
        %v1538 = vpack.c.b16 %v1520, %v1519
        %v1539 = vpack.c.b16 %v1522, %v1521
        %v1540 = vpack.c.b16 %v1524, %v1523
        %1557 = vmatprep.subr.bf16.mxu0 0
        %1558 = vmatpush1.bf16.msra.mxu0 %v1525
        %1559 = vmatprep.subr.bf16.mxu0 0
        %1560 = vmatpush1.bf16.msra.mxu0 %v1526
        %1561 = vmatprep.subr.bf16.mxu0 0
        %1562 = vmatpush1.bf16.msra.mxu0 %v1527
        %1563 = vmatprep.subr.bf16.mxu0 0
        %1564 = vmatpush1.bf16.msra.mxu0 %v1528
        %1565 = vmatprep.subr.bf16.mxu0 0
        %1566 = vmatpush1.bf16.msra.mxu0 %v1529
        %1567 = vmatprep.subr.bf16.mxu0 0
        %1568 = vmatpush1.bf16.msra.mxu0 %v1530
        %1569 = vmatprep.subr.bf16.mxu0 0
        %1570 = vmatpush1.bf16.msra.mxu0 %v1531
        %1571 = vmatprep.subr.bf16.mxu0 0
        %1572 = vmatpush1.bf16.msra.mxu0 %v1532
        %1573 = vmatprep.subr.bf16.mxu0 0
        %1574 = vmatpush1.bf16.msra.mxu0 %v1533
        %1575 = vmatprep.subr.bf16.mxu0 0
        %1576 = vmatpush1.bf16.msra.mxu0 %v1534
        %1577 = vmatprep.subr.bf16.mxu0 0
        %1578 = vmatpush1.bf16.msra.mxu0 %v1535
        %1579 = vmatprep.subr.bf16.mxu0 0
        %1580 = vmatpush1.bf16.msra.mxu0 %v1536
        %1581 = vmatprep.subr.bf16.mxu0 0
        %1582 = vmatpush1.bf16.msra.mxu0 %v1537
        %1583 = vmatprep.subr.bf16.mxu0 0
        %1584 = vmatpush1.bf16.msra.mxu0 %v1538
        %1585 = vmatprep.subr.bf16.mxu0 0
        %1586 = vmatpush1.bf16.msra.mxu0 %v1539
        %1587 = vmatprep.subr.bf16.mxu0 0
        %1588 = vmatpush1.bf16.msra.mxu0 %v1540
        %1589 = vmatprep.mubr.bf16.mxu0 %v1407
        %1590 = vmatmul.mubr.bf16.gmra.mrb[0].mxu0 %v1406
        %v1591 = vpop.f32.mrb[0].mxu0
        %v1592 = vadd.f32 %v1459, %v1591
        %v1593 = vpop.f32.mrb[0].mxu0
        %v1594 = vpop.f32.mrb[0].mxu0
        %v1595 = vadd.f32 %v1459, %v1594
        %v1596 = vpop.f32.mrb[0].mxu0
        %1597 = vmatprep.mubr.bf16.mxu0 %v1409
        %1598 = vmatmul.mubr.bf16.gmra.mrb[0].mxu0 %v1408
        %v1599 = vpop.f32.mrb[0].mxu0
        %v1600 = vadd.f32 %v1459, %v1599
        %v1601 = vpop.f32.mrb[0].mxu0
        %v1602 = vpop.f32.mrb[0].mxu0
        %v1603 = vadd.f32 %v1459, %v1602
        %v1604 = vpop.f32.mrb[0].mxu0
        %1605 = vmatprep.mubr.bf16.mxu0 %v1411
        %1606 = vmatmul.mubr.bf16.gmra.mrb[0].mxu0 %v1410
        %v1607 = vpop.f32.mrb[0].mxu0
        %v1608 = vadd.f32 %v1459, %v1607
        %v1609 = vpop.f32.mrb[0].mxu0
        %v1610 = vpop.f32.mrb[0].mxu0
        %v1611 = vadd.f32 %v1459, %v1610
        %v1612 = vpop.f32.mrb[0].mxu0
        %1613 = vmatprep.mubr.bf16.mxu0 %v1413
        %1614 = vmatmul.mubr.bf16.gmra.mrb[0].mxu0 %v1412
        %v1615 = vpop.f32.mrb[0].mxu0
        %v1616 = vadd.f32 %v1459, %v1615
        %v1617 = vpop.f32.mrb[0].mxu0
        %v1618 = vpop.f32.mrb[0].mxu0
        %v1619 = vadd.f32 %v1459, %v1618
        %v1620 = vpop.f32.mrb[0].mxu0
        %1621 = vmatprep.mubr.bf16.mxu0 %v1415
        %1622 = vmatmul.mubr.bf16.gmra.mrb[0].mxu0 %v1414
        %v1623 = vpop.f32.mrb[0].mxu0
        %v1624 = vadd.f32 %v1459, %v1623
        %v1625 = vpop.f32.mrb[0].mxu0
        %v1626 = vpop.f32.mrb[0].mxu0
        %v1627 = vadd.f32 %v1459, %v1626
        %v1628 = vpop.f32.mrb[0].mxu0
        %1629 = vmatprep.mubr.bf16.mxu0 %v1417
        %1630 = vmatmul.mubr.bf16.gmra.mrb[0].mxu0 %v1416
        %v1631 = vpop.f32.mrb[0].mxu0
        %v1632 = vadd.f32 %v1459, %v1631
        %v1633 = vpop.f32.mrb[0].mxu0
        %v1634 = vpop.f32.mrb[0].mxu0
        %v1635 = vadd.f32 %v1459, %v1634
        %v1636 = vpop.f32.mrb[0].mxu0
        %1637 = vmatprep.mubr.bf16.mxu0 %v1419
        %1638 = vmatmul.mubr.bf16.gmra.mrb[0].mxu0 %v1418
        %v1639 = vpop.f32.mrb[0].mxu0
        %v1640 = vadd.f32 %v1459, %v1639
        %v1641 = vpop.f32.mrb[0].mxu0
        %v1642 = vpop.f32.mrb[0].mxu0
        %v1643 = vadd.f32 %v1459, %v1642
        %v1644 = vpop.f32.mrb[0].mxu0
        %1645 = vmatprep.mubr.bf16.mxu0 %v1421
        %1646 = vmatmul.mubr.bf16.gmra.mrb[0].mxu0 %v1420
        %v1647 = vpop.f32.mrb[0].mxu0
        %v1648 = vadd.f32 %v1459, %v1647
        %v1649 = vpop.f32.mrb[0].mxu0
        %v1650 = vpop.f32.mrb[0].mxu0
        %v1651 = vadd.f32 %v1459, %v1650
        %v1652 = vpop.f32.mrb[0].mxu0
        %1653 = vdwg.mxu0
        %v1654 = vpack.c.bf16 %v1595, %v1592
        %v1655 = vpack.c.bf16 %v1603, %v1600
        %v1656 = vpack.c.bf16 %v1611, %v1608
        %v1657 = vpack.c.bf16 %v1619, %v1616
        %v1658 = vpack.c.bf16 %v1627, %v1624
        %v1659 = vpack.c.bf16 %v1635, %v1632
        %v1660 = vpack.c.bf16 %v1643, %v1640
        %v1661 = vpack.c.bf16 %v1651, %v1648
        %v1662 = vld [vmem:[%s4] sm:$0xf]
        %v1663 = vld [vmem:[%s4 + $0x4] sm:$0xf]
        %v1664 = vld [vmem:[%s4 + $0x8] sm:$0xf]
        %v1665 = vld [vmem:[%s4 + $0xc] sm:$0xf]
        %v1666 = vld [vmem:[%s4 + $0x10] sm:$0xf]
        %v1667 = vld [vmem:[%s4 + $0x14] sm:$0xf]
        %v1668 = vld [vmem:[%s4 + $0x18] sm:$0xf]
        %v1669 = vld [vmem:[%s4 + $0x1c] sm:$0xf]
        %v1670 = vld [vmem:[%s4 + $0x20] sm:$0xf]
        %v1671 = vld [vmem:[%s4 + $0x24] sm:$0xf]
        %v1672 = vld [vmem:[%s4 + $0x28] sm:$0xf]
        %v1673 = vld [vmem:[%s4 + $0x2c] sm:$0xf]
        %v1674 = vld [vmem:[%s4 + $0x30] sm:$0xf]
        %v1675 = vld [vmem:[%s4 + $0x34] sm:$0xf]
        %v1676 = vld [vmem:[%s4 + $0x38] sm:$0xf]
        %v1677 = vld [vmem:[%s4 + $0x3c] sm:$0xf]
        %v1678 = vld [vmem:[#allocation4 + $0x7] sm:$0x1]
        %v1680 = vlaneseq
        %v1681 = vshrl.u32 %v1680, 7
        %v1682 = vsub.s32 0, %v1681
        %v1683 = vrot.slane %v1678, %v1682
        %v1701 = vunpack.c.l.b16 %v1662
        %v1702 = vunpack.c.l.b16 %v1663
        %v1703 = vunpack.c.l.b16 %v1664
        %v1704 = vunpack.c.l.b16 %v1665
        %v1705 = vunpack.c.l.b16 %v1666
        %v1706 = vunpack.c.l.b16 %v1667
        %v1707 = vunpack.c.l.b16 %v1668
        %v1708 = vunpack.c.l.b16 %v1669
        %v1709 = vunpack.c.l.b16 %v1670
        %v1710 = vunpack.c.l.b16 %v1671
        %v1711 = vunpack.c.l.b16 %v1672
        %v1712 = vunpack.c.l.b16 %v1673
        %v1713 = vunpack.c.l.b16 %v1674
        %v1714 = vunpack.c.l.b16 %v1675
        %v1715 = vunpack.c.l.b16 %v1676
        %v1716 = vunpack.c.l.b16 %v1677
        %v1717 = vpack.c.b16 %v1702, %v1701
        %v1718 = vpack.c.b16 %v1704, %v1703
        %v1719 = vpack.c.b16 %v1706, %v1705
        %v1720 = vpack.c.b16 %v1708, %v1707
        %v1721 = vpack.c.b16 %v1710, %v1709
        %v1722 = vpack.c.b16 %v1712, %v1711
        %v1723 = vpack.c.b16 %v1714, %v1713
        %v1724 = vpack.c.b16 %v1716, %v1715
        %1733 = vmatprep.subr.bf16.mxu0 0
        %1734 = vmatpush1.bf16.msra.mxu0 %v1717
        %1735 = vmatprep.subr.bf16.mxu0 0
        %1736 = vmatpush1.bf16.msra.mxu0 %v1718
        %1737 = vmatprep.subr.bf16.mxu0 0
        %1738 = vmatpush1.bf16.msra.mxu0 %v1719
        %1739 = vmatprep.subr.bf16.mxu0 0
        %1740 = vmatpush1.bf16.msra.mxu0 %v1720
        %1741 = vmatprep.subr.bf16.mxu0 0
        %1742 = vmatpush1.bf16.msra.mxu0 %v1721
        %1743 = vmatprep.subr.bf16.mxu0 0
        %1744 = vmatpush1.bf16.msra.mxu0 %v1722
        %1745 = vmatprep.subr.bf16.mxu0 0
        %1746 = vmatpush1.bf16.msra.mxu0 %v1723
        %1747 = vmatprep.subr.bf16.mxu0 0
        %1748 = vmatpush1.bf16.msra.mxu0 %v1724
        %1749 = vmatprep.subr.bf16.mxu0 0
        %1750 = vmatpush1.bf16.msra.mxu0 0
        %1751 = vmatprep.subr.bf16.mxu0 0
        %1752 = vmatpush1.bf16.msra.mxu0 0
        %1753 = vmatprep.subr.bf16.mxu0 0
        %1754 = vmatpush1.bf16.msra.mxu0 0
        %1755 = vmatprep.subr.bf16.mxu0 0
        %1756 = vmatpush1.bf16.msra.mxu0 0
        %1757 = vmatprep.subr.bf16.mxu0 0
        %1758 = vmatpush1.bf16.msra.mxu0 0
        %1759 = vmatprep.subr.bf16.mxu0 0
        %1760 = vmatpush1.bf16.msra.mxu0 0
        %1761 = vmatprep.subr.bf16.mxu0 0
        %1762 = vmatpush1.bf16.msra.mxu0 0
        %1763 = vmatprep.subr.bf16.mxu0 0
        %1764 = vmatpush1.bf16.msra.mxu0 0
        %1765 = vmatprep.mubr.bf16.mxu0 0
        %1766 = vmatmul.mubr.bf16.gmra.mrb[0].mxu0 %v1654
        %v1767 = vpop.f32.mrb[0].mxu0
        %v1768 = vadd.f32 %v1683, %v1767
        %v1769 = vpop.f32.mrb[0].mxu0
        %v1770 = vpop.f32.mrb[0].mxu0
        %v1771 = vadd.f32 %v1683, %v1770
        %v1772 = vpop.f32.mrb[0].mxu0
        %1773 = vmatprep.mubr.bf16.mxu0 0
        %1774 = vmatmul.mubr.bf16.gmra.mrb[0].mxu0 %v1655
        %v1775 = vpop.f32.mrb[0].mxu0
        %v1776 = vadd.f32 %v1683, %v1775
        %v1777 = vpop.f32.mrb[0].mxu0
        %v1778 = vpop.f32.mrb[0].mxu0
        %v1779 = vadd.f32 %v1683, %v1778
        %v1780 = vpop.f32.mrb[0].mxu0
        %1781 = vmatprep.mubr.bf16.mxu0 0
        %1782 = vmatmul.mubr.bf16.gmra.mrb[0].mxu0 %v1656
        %v1783 = vpop.f32.mrb[0].mxu0
        %v1784 = vadd.f32 %v1683, %v1783
        %v1785 = vpop.f32.mrb[0].mxu0
        %v1786 = vpop.f32.mrb[0].mxu0
        %v1787 = vadd.f32 %v1683, %v1786
        %v1788 = vpop.f32.mrb[0].mxu0
        %1789 = vmatprep.mubr.bf16.mxu0 0
        %1790 = vmatmul.mubr.bf16.gmra.mrb[0].mxu0 %v1657
        %v1791 = vpop.f32.mrb[0].mxu0
        %v1792 = vadd.f32 %v1683, %v1791
        %v1793 = vpop.f32.mrb[0].mxu0
        %v1794 = vpop.f32.mrb[0].mxu0
        %v1795 = vadd.f32 %v1683, %v1794
        %v1796 = vpop.f32.mrb[0].mxu0
        %1797 = vmatprep.mubr.bf16.mxu0 0
        %1798 = vmatmul.mubr.bf16.gmra.mrb[0].mxu0 %v1658
        %v1799 = vpop.f32.mrb[0].mxu0
        %v1800 = vadd.f32 %v1683, %v1799
        %v1801 = vpop.f32.mrb[0].mxu0
        %v1802 = vpop.f32.mrb[0].mxu0
        %v1803 = vadd.f32 %v1683, %v1802
        %v1804 = vpop.f32.mrb[0].mxu0
        %1805 = vmatprep.mubr.bf16.mxu0 0
        %1806 = vmatmul.mubr.bf16.gmra.mrb[0].mxu0 %v1659
        %v1807 = vpop.f32.mrb[0].mxu0
        %v1808 = vadd.f32 %v1683, %v1807
        %v1809 = vpop.f32.mrb[0].mxu0
        %v1810 = vpop.f32.mrb[0].mxu0
        %v1811 = vadd.f32 %v1683, %v1810
        %v1812 = vpop.f32.mrb[0].mxu0
        %1813 = vmatprep.mubr.bf16.mxu0 0
        %1814 = vmatmul.mubr.bf16.gmra.mrb[0].mxu0 %v1660
        %v1815 = vpop.f32.mrb[0].mxu0
        %v1816 = vadd.f32 %v1683, %v1815
        %v1817 = vpop.f32.mrb[0].mxu0
        %v1818 = vpop.f32.mrb[0].mxu0
        %v1819 = vadd.f32 %v1683, %v1818
        %v1820 = vpop.f32.mrb[0].mxu0
        %1821 = vmatprep.mubr.bf16.mxu0 0
        %1822 = vmatmul.mubr.bf16.gmra.mrb[0].mxu0 %v1661
        %v1823 = vpop.f32.mrb[0].mxu0
        %v1824 = vadd.f32 %v1683, %v1823
        %v1825 = vpop.f32.mrb[0].mxu0
        %v1826 = vpop.f32.mrb[0].mxu0
        %v1827 = vadd.f32 %v1683, %v1826
        %v1828 = vpop.f32.mrb[0].mxu0
        %1829 = vdwg.mxu0
        %v1830 = vmax.f32 %v1768, 0.0
        %v1831 = vmax.f32 %v1771, 0.0
        %v1832 = vmax.f32 %v1776, 0.0
        %v1833 = vmax.f32 %v1779, 0.0
        %v1834 = vmax.f32 %v1784, 0.0
        %v1835 = vmax.f32 %v1787, 0.0
        %v1836 = vmax.f32 %v1792, 0.0
        %v1837 = vmax.f32 %v1795, 0.0
        %v1838 = vmax.f32 %v1800, 0.0
        %v1839 = vmax.f32 %v1803, 0.0
        %v1840 = vmax.f32 %v1808, 0.0
        %v1841 = vmax.f32 %v1811, 0.0
        %v1842 = vmax.f32 %v1816, 0.0
        %v1843 = vmax.f32 %v1819, 0.0
        %v1844 = vmax.f32 %v1824, 0.0
        %v1845 = vmax.f32 %v1827, 0.0
        %v1846 = vpack.c.bf16 %v1831, %v1830
        %v1847 = vpack.c.bf16 %v1833, %v1832
        %v1848 = vpack.c.bf16 %v1835, %v1834
        %v1849 = vpack.c.bf16 %v1837, %v1836
        %v1850 = vpack.c.bf16 %v1839, %v1838
        %v1851 = vpack.c.bf16 %v1841, %v1840
        %v1852 = vpack.c.bf16 %v1843, %v1842
        %v1853 = vpack.c.bf16 %v1845, %v1844
        %v1854 = vld [vmem:[%s5] sm:$0xf]
        %v1855 = vld [vmem:[%s5 + $0x4] sm:$0xf]
        %v1856 = vld [vmem:[%s5 + $0x8] sm:$0xf]
        %v1857 = vld [vmem:[%s5 + $0xc] sm:$0xf]
        %v1858 = vld [vmem:[%s5 + $0x10] sm:$0xf]
        %v1859 = vld [vmem:[%s5 + $0x14] sm:$0xf]
        %v1860 = vld [vmem:[%s5 + $0x18] sm:$0xf]
        %v1861 = vld [vmem:[%s5 + $0x1c] sm:$0xf]
        %v1862 = vld [vmem:[%s5 + $0x20] sm:$0xf]
        %v1863 = vld [vmem:[%s5 + $0x24] sm:$0xf]
        %v1864 = vld [vmem:[%s5 + $0x28] sm:$0xf]
        %v1865 = vld [vmem:[%s5 + $0x2c] sm:$0xf]
        %v1866 = vld [vmem:[%s5 + $0x30] sm:$0xf]
        %v1867 = vld [vmem:[%s5 + $0x34] sm:$0xf]
        %v1868 = vld [vmem:[%s5 + $0x38] sm:$0xf]
        %v1869 = vld [vmem:[%s5 + $0x3c] sm:$0xf]
        %v1870 = vld [vmem:[#allocation4 + $0x8] sm:$0x1]
        %v1872 = vlaneseq
        %v1873 = vshrl.u32 %v1872, 7
        %v1874 = vsub.s32 0, %v1873
        %v1875 = vrot.slane %v1870, %v1874
        %v1893 = vunpack.c.l.b16 %v1854
        %v1894 = vunpack.c.l.b16 %v1855
        %v1895 = vunpack.c.l.b16 %v1856
        %v1896 = vunpack.c.l.b16 %v1857
        %v1897 = vunpack.c.l.b16 %v1858
        %v1898 = vunpack.c.l.b16 %v1859
        %v1899 = vunpack.c.l.b16 %v1860
        %v1900 = vunpack.c.l.b16 %v1861
        %v1901 = vunpack.c.l.b16 %v1862
        %v1902 = vunpack.c.l.b16 %v1863
        %v1903 = vunpack.c.l.b16 %v1864
        %v1904 = vunpack.c.l.b16 %v1865
        %v1905 = vunpack.c.l.b16 %v1866
        %v1906 = vunpack.c.l.b16 %v1867
        %v1907 = vunpack.c.l.b16 %v1868
        %v1908 = vunpack.c.l.b16 %v1869
        %v1909 = vpack.c.b16 %v1894, %v1893
        %v1910 = vpack.c.b16 %v1896, %v1895
        %v1911 = vpack.c.b16 %v1898, %v1897
        %v1912 = vpack.c.b16 %v1900, %v1899
        %v1913 = vpack.c.b16 %v1902, %v1901
        %v1914 = vpack.c.b16 %v1904, %v1903
        %v1915 = vpack.c.b16 %v1906, %v1905
        %v1916 = vpack.c.b16 %v1908, %v1907
        %1925 = vmatprep.subr.bf16.mxu0 0
        %1926 = vmatpush1.bf16.msra.mxu0 %v1909
        %1927 = vmatprep.subr.bf16.mxu0 0
        %1928 = vmatpush1.bf16.msra.mxu0 %v1910
        %1929 = vmatprep.subr.bf16.mxu0 0
        %1930 = vmatpush1.bf16.msra.mxu0 %v1911
        %1931 = vmatprep.subr.bf16.mxu0 0
        %1932 = vmatpush1.bf16.msra.mxu0 %v1912
        %1933 = vmatprep.subr.bf16.mxu0 0
        %1934 = vmatpush1.bf16.msra.mxu0 %v1913
        %1935 = vmatprep.subr.bf16.mxu0 0
        %1936 = vmatpush1.bf16.msra.mxu0 %v1914
        %1937 = vmatprep.subr.bf16.mxu0 0
        %1938 = vmatpush1.bf16.msra.mxu0 %v1915
        %1939 = vmatprep.subr.bf16.mxu0 0
        %1940 = vmatpush1.bf16.msra.mxu0 %v1916
        %1941 = vmatprep.subr.bf16.mxu0 0
        %1942 = vmatpush1.bf16.msra.mxu0 0
        %1943 = vmatprep.subr.bf16.mxu0 0
        %1944 = vmatpush1.bf16.msra.mxu0 0
        %1945 = vmatprep.subr.bf16.mxu0 0
        %1946 = vmatpush1.bf16.msra.mxu0 0
        %1947 = vmatprep.subr.bf16.mxu0 0
        %1948 = vmatpush1.bf16.msra.mxu0 0
        %1949 = vmatprep.subr.bf16.mxu0 0
        %1950 = vmatpush1.bf16.msra.mxu0 0
        %1951 = vmatprep.subr.bf16.mxu0 0
        %1952 = vmatpush1.bf16.msra.mxu0 0
        %1953 = vmatprep.subr.bf16.mxu0 0
        %1954 = vmatpush1.bf16.msra.mxu0 0
        %1955 = vmatprep.subr.bf16.mxu0 0
        %1956 = vmatpush1.bf16.msra.mxu0 0
        %1957 = vmatprep.mubr.bf16.mxu0 0
        %1958 = vmatmul.mubr.bf16.gmra.mrb[0].mxu0 %v1846
        %v1959 = vpop.f32.mrb[0].mxu0
        %v1960 = vadd.f32 %v1875, %v1959
        %v1961 = vpop.f32.mrb[0].mxu0
        %v1962 = vpop.f32.mrb[0].mxu0
        %v1963 = vadd.f32 %v1875, %v1962
        %v1964 = vpop.f32.mrb[0].mxu0
        %1965 = vmatprep.mubr.bf16.mxu0 0
        %1966 = vmatmul.mubr.bf16.gmra.mrb[0].mxu0 %v1847
        %v1967 = vpop.f32.mrb[0].mxu0
        %v1968 = vadd.f32 %v1875, %v1967
        %v1969 = vpop.f32.mrb[0].mxu0
        %v1970 = vpop.f32.mrb[0].mxu0
        %v1971 = vadd.f32 %v1875, %v1970
        %v1972 = vpop.f32.mrb[0].mxu0
        %1973 = vmatprep.mubr.bf16.mxu0 0
        %1974 = vmatmul.mubr.bf16.gmra.mrb[0].mxu0 %v1848
        %v1975 = vpop.f32.mrb[0].mxu0
        %v1976 = vadd.f32 %v1875, %v1975
        %v1977 = vpop.f32.mrb[0].mxu0
        %v1978 = vpop.f32.mrb[0].mxu0
        %v1979 = vadd.f32 %v1875, %v1978
        %v1980 = vpop.f32.mrb[0].mxu0
        %1981 = vmatprep.mubr.bf16.mxu0 0
        %1982 = vmatmul.mubr.bf16.gmra.mrb[0].mxu0 %v1849
        %v1983 = vpop.f32.mrb[0].mxu0
        %v1984 = vadd.f32 %v1875, %v1983
        %v1985 = vpop.f32.mrb[0].mxu0
        %v1986 = vpop.f32.mrb[0].mxu0
        %v1987 = vadd.f32 %v1875, %v1986
        %v1988 = vpop.f32.mrb[0].mxu0
        %1989 = vmatprep.mubr.bf16.mxu0 0
        %1990 = vmatmul.mubr.bf16.gmra.mrb[0].mxu0 %v1850
        %v1991 = vpop.f32.mrb[0].mxu0
        %v1992 = vadd.f32 %v1875, %v1991
        %v1993 = vpop.f32.mrb[0].mxu0
        %v1994 = vpop.f32.mrb[0].mxu0
        %v1995 = vadd.f32 %v1875, %v1994
        %v1996 = vpop.f32.mrb[0].mxu0
        %1997 = vmatprep.mubr.bf16.mxu0 0
        %1998 = vmatmul.mubr.bf16.gmra.mrb[0].mxu0 %v1851
        %v1999 = vpop.f32.mrb[0].mxu0
        %v2000 = vadd.f32 %v1875, %v1999
        %v2001 = vpop.f32.mrb[0].mxu0
        %v2002 = vpop.f32.mrb[0].mxu0
        %v2003 = vadd.f32 %v1875, %v2002
        %v2004 = vpop.f32.mrb[0].mxu0
        %2005 = vmatprep.mubr.bf16.mxu0 0
        %2006 = vmatmul.mubr.bf16.gmra.mrb[0].mxu0 %v1852
        %v2007 = vpop.f32.mrb[0].mxu0
        %v2008 = vadd.f32 %v1875, %v2007
        %v2009 = vpop.f32.mrb[0].mxu0
        %v2010 = vpop.f32.mrb[0].mxu0
        %v2011 = vadd.f32 %v1875, %v2010
        %v2012 = vpop.f32.mrb[0].mxu0
        %2013 = vmatprep.mubr.bf16.mxu0 0
        %2014 = vmatmul.mubr.bf16.gmra.mrb[0].mxu0 %v1853
        %v2015 = vpop.f32.mrb[0].mxu0
        %v2016 = vadd.f32 %v1875, %v2015
        %v2017 = vpop.f32.mrb[0].mxu0
        %v2018 = vpop.f32.mrb[0].mxu0
        %v2019 = vadd.f32 %v1875, %v2018
        %v2020 = vpop.f32.mrb[0].mxu0
        %2021 = vdwg.mxu0
        %2038 = vrot.lane.b32.xlu0 %v1960, 127
        %v2039 = vpop.permute.xlu0 %2038
        %2040 = vrot.lane.b32.xlu0 %v1963, 127
        %v2041 = vpop.permute.xlu0 %2040
        %2042 = vrot.lane.b32.xlu0 %v1968, 127
        %v2043 = vpop.permute.xlu0 %2042
        %2044 = vrot.lane.b32.xlu0 %v1971, 127
        %v2045 = vpop.permute.xlu0 %2044
        %2046 = vrot.lane.b32.xlu0 %v1976, 127
        %v2047 = vpop.permute.xlu0 %2046
        %2048 = vrot.lane.b32.xlu0 %v1979, 127
        %v2049 = vpop.permute.xlu0 %2048
        %2050 = vrot.lane.b32.xlu0 %v1984, 127
        %v2051 = vpop.permute.xlu0 %2050
        %2052 = vrot.lane.b32.xlu0 %v1987, 127
        %v2053 = vpop.permute.xlu0 %2052
        %2054 = vrot.lane.b32.xlu0 %v1992, 127
        %v2055 = vpop.permute.xlu0 %2054
        %2056 = vrot.lane.b32.xlu0 %v1995, 127
        %v2057 = vpop.permute.xlu0 %2056
        %2058 = vrot.lane.b32.xlu0 %v2000, 127
        %v2059 = vpop.permute.xlu0 %2058
        %2060 = vrot.lane.b32.xlu0 %v2003, 127
        %v2061 = vpop.permute.xlu0 %2060
        %2062 = vrot.lane.b32.xlu0 %v2008, 127
        %v2063 = vpop.permute.xlu0 %2062
        %2064 = vrot.lane.b32.xlu0 %v2011, 127
        %v2065 = vpop.permute.xlu0 %2064
        %2066 = vrot.lane.b32.xlu0 %v2016, 127
        %v2067 = vpop.permute.xlu0 %2066
        %2068 = vrot.lane.b32.xlu0 %v2019, 127
        %v2069 = vpop.permute.xlu0 %2068
        %vm2086 = vcmask 64512
        %v2087 = vsel %vm2086, %v2039, 0.0
        %2088 = vadd.xlane.f32.xlu0 %v2087
        %v2089 = vpop.xlane.xlu0 %2088
        %v2090 = vsel %vm2086, %v2041, 0.0
        %2091 = vadd.xlane.f32.xlu0 %v2090
        %v2092 = vpop.xlane.xlu0 %2091
        %v2093 = vsel %vm2086, %v2043, 0.0
        %2094 = vadd.xlane.f32.xlu0 %v2093
        %v2095 = vpop.xlane.xlu0 %2094
        %v2096 = vsel %vm2086, %v2045, 0.0
        %2097 = vadd.xlane.f32.xlu0 %v2096
        %v2098 = vpop.xlane.xlu0 %2097
        %v2099 = vsel %vm2086, %v2047, 0.0
        %2100 = vadd.xlane.f32.xlu0 %v2099
        %v2101 = vpop.xlane.xlu0 %2100
        %v2102 = vsel %vm2086, %v2049, 0.0
        %2103 = vadd.xlane.f32.xlu0 %v2102
        %v2104 = vpop.xlane.xlu0 %2103
        %v2105 = vsel %vm2086, %v2051, 0.0
        %2106 = vadd.xlane.f32.xlu0 %v2105
        %v2107 = vpop.xlane.xlu0 %2106
        %v2108 = vsel %vm2086, %v2053, 0.0
        %2109 = vadd.xlane.f32.xlu0 %v2108
        %v2110 = vpop.xlane.xlu0 %2109
        %v2111 = vsel %vm2086, %v2055, 0.0
        %2112 = vadd.xlane.f32.xlu0 %v2111
        %v2113 = vpop.xlane.xlu0 %2112
        %v2114 = vsel %vm2086, %v2057, 0.0
        %2115 = vadd.xlane.f32.xlu0 %v2114
        %v2116 = vpop.xlane.xlu0 %2115
        %v2117 = vsel %vm2086, %v2059, 0.0
        %2118 = vadd.xlane.f32.xlu0 %v2117
        %v2119 = vpop.xlane.xlu0 %2118
        %v2120 = vsel %vm2086, %v2061, 0.0
        %2121 = vadd.xlane.f32.xlu0 %v2120
        %v2122 = vpop.xlane.xlu0 %2121
        %v2123 = vsel %vm2086, %v2063, 0.0
        %2124 = vadd.xlane.f32.xlu0 %v2123
        %v2125 = vpop.xlane.xlu0 %2124
        %v2126 = vsel %vm2086, %v2065, 0.0
        %2127 = vadd.xlane.f32.xlu0 %v2126
        %v2128 = vpop.xlane.xlu0 %2127
        %v2129 = vsel %vm2086, %v2067, 0.0
        %2130 = vadd.xlane.f32.xlu0 %v2129
        %v2131 = vpop.xlane.xlu0 %2130
        %v2132 = vsel %vm2086, %v2069, 0.0
        %2133 = vadd.xlane.f32.xlu0 %v2132
        %v2134 = vpop.xlane.xlu0 %2133
        %v2135 = vrcp.pop 8.0
        %v2136 = vmul.f32 %v2089, %v2135
        %v2137 = vmul.f32 %v2092, %v2135
        %v2138 = vmul.f32 %v2095, %v2135
        %v2139 = vmul.f32 %v2098, %v2135
        %v2140 = vmul.f32 %v2101, %v2135
        %v2141 = vmul.f32 %v2104, %v2135
        %v2142 = vmul.f32 %v2107, %v2135
        %v2143 = vmul.f32 %v2110, %v2135
        %v2144 = vmul.f32 %v2113, %v2135
        %v2145 = vmul.f32 %v2116, %v2135
        %v2146 = vmul.f32 %v2119, %v2135
        %v2147 = vmul.f32 %v2122, %v2135
        %v2148 = vmul.f32 %v2125, %v2135
        %v2149 = vmul.f32 %v2128, %v2135
        %v2150 = vmul.f32 %v2131, %v2135
        %v2151 = vmul.f32 %v2134, %v2135
        %v2152 = vsub.f32 %v1960, %v2136
        %v2153 = vsub.f32 %v1963, %v2137
        %v2154 = vsub.f32 %v1968, %v2138
        %v2155 = vsub.f32 %v1971, %v2139
        %v2156 = vsub.f32 %v1976, %v2140
        %v2157 = vsub.f32 %v1979, %v2141
        %v2158 = vsub.f32 %v1984, %v2142
        %v2159 = vsub.f32 %v1987, %v2143
        %v2160 = vsub.f32 %v1992, %v2144
        %v2161 = vsub.f32 %v1995, %v2145
        %v2162 = vsub.f32 %v2000, %v2146
        %v2163 = vsub.f32 %v2003, %v2147
        %v2164 = vsub.f32 %v2008, %v2148
        %v2165 = vsub.f32 %v2011, %v2149
        %v2166 = vsub.f32 %v2016, %v2150
        %v2167 = vsub.f32 %v2019, %v2151
        %2169 = vset.pattern.permute.xlu0 0
        %2170 = vperm.xlu0 %2169, %v2152
        %v2171 = vpop.permute.xlu0 %2170
        %2174 = vset.pattern.permute.xlu0 0
        %2175 = vperm.xlu0 %2174, %v2153
        %v2176 = vpop.permute.xlu0 %2175
        %2179 = vset.pattern.permute.xlu0 0
        %2180 = vperm.xlu0 %2179, %v2154
        %v2181 = vpop.permute.xlu0 %2180
        %2184 = vset.pattern.permute.xlu0 0
        %2185 = vperm.xlu0 %2184, %v2155
        %v2186 = vpop.permute.xlu0 %2185
        %2189 = vset.pattern.permute.xlu0 0
        %2190 = vperm.xlu0 %2189, %v2156
        %v2191 = vpop.permute.xlu0 %2190
        %2194 = vset.pattern.permute.xlu0 0
        %2195 = vperm.xlu0 %2194, %v2157
        %v2196 = vpop.permute.xlu0 %2195
        %2199 = vset.pattern.permute.xlu0 0
        %2200 = vperm.xlu0 %2199, %v2158
        %v2201 = vpop.permute.xlu0 %2200
        %2204 = vset.pattern.permute.xlu0 0
        %2205 = vperm.xlu0 %2204, %v2159
        %v2206 = vpop.permute.xlu0 %2205
        %2209 = vset.pattern.permute.xlu0 0
        %2210 = vperm.xlu0 %2209, %v2160
        %v2211 = vpop.permute.xlu0 %2210
        %2214 = vset.pattern.permute.xlu0 0
        %2215 = vperm.xlu0 %2214, %v2161
        %v2216 = vpop.permute.xlu0 %2215
        %2219 = vset.pattern.permute.xlu0 0
        %2220 = vperm.xlu0 %2219, %v2162
        %v2221 = vpop.permute.xlu0 %2220
        %2224 = vset.pattern.permute.xlu0 0
        %2225 = vperm.xlu0 %2224, %v2163
        %v2226 = vpop.permute.xlu0 %2225
        %2229 = vset.pattern.permute.xlu0 0
        %2230 = vperm.xlu0 %2229, %v2164
        %v2231 = vpop.permute.xlu0 %2230
        %2234 = vset.pattern.permute.xlu0 0
        %2235 = vperm.xlu0 %2234, %v2165
        %v2236 = vpop.permute.xlu0 %2235
        %2239 = vset.pattern.permute.xlu0 0
        %2240 = vperm.xlu0 %2239, %v2166
        %v2241 = vpop.permute.xlu0 %2240
        %2244 = vset.pattern.permute.xlu0 0
        %2245 = vperm.xlu0 %2244, %v2167
        %v2246 = vpop.permute.xlu0 %2245
        %v2248 = vadd.f32 %v1960, %v2171
        %v2249 = vadd.f32 %v1963, %v2176
        %v2250 = vadd.f32 %v1968, %v2181
        %v2251 = vadd.f32 %v1971, %v2186
        %v2252 = vadd.f32 %v1976, %v2191
        %v2253 = vadd.f32 %v1979, %v2196
        %v2254 = vadd.f32 %v1984, %v2201
        %v2255 = vadd.f32 %v1987, %v2206
        %v2256 = vadd.f32 %v1992, %v2211
        %v2257 = vadd.f32 %v1995, %v2216
        %v2258 = vadd.f32 %v2000, %v2221
        %v2259 = vadd.f32 %v2003, %v2226
        %v2260 = vadd.f32 %v2008, %v2231
        %v2261 = vadd.f32 %v2011, %v2236
        %v2262 = vadd.f32 %v2016, %v2241
        %v2263 = vadd.f32 %v2019, %v2246
        %2264 = vst [vmem:[%s308] sm:$0xff] %v2248
        %2265 = vst [vmem:[%s308 + $0x8] sm:$0xff] %v2249
        %2266 = vst [vmem:[%s308 + $0x10] sm:$0xff] %v2250
        %2267 = vst [vmem:[%s308 + $0x18] sm:$0xff] %v2251
        %2268 = vst [vmem:[%s308 + $0x20] sm:$0xff] %v2252
        %2269 = vst [vmem:[%s308 + $0x28] sm:$0xff] %v2253
        %2270 = vst [vmem:[%s308 + $0x30] sm:$0xff] %v2254
        %2271 = vst [vmem:[%s308 + $0x38] sm:$0xff] %v2255
        %2272 = vst [vmem:[%s308 + $0x40] sm:$0xff] %v2256
        %2273 = vst [vmem:[%s308 + $0x48] sm:$0xff] %v2257
        %2274 = vst [vmem:[%s308 + $0x50] sm:$0xff] %v2258
        %2275 = vst [vmem:[%s308 + $0x58] sm:$0xff] %v2259
        %2276 = vst [vmem:[%s308 + $0x60] sm:$0xff] %v2260
        %2277 = vst [vmem:[%s308 + $0x68] sm:$0xff] %v2261
        %2278 = vst [vmem:[%s308 + $0x70] sm:$0xff] %v2262
        %2279 = vst [vmem:[%s308 + $0x78] sm:$0xff] %v2263
        %s2280 = smul.u32 16, %s20
        %p2281 = scmp.lt.s32.totalorder %s2280, 31
        %s2282 = scalar_select %p2281, %s2280, 31
        %s2283 = smul.addr %s2282, 8
        %s2284 = scalar_lea.vmem %s7, %s2283
        // Predicated region
        $region57: #{dqn_forward.1} parent=47 // pred_check
          %p2285 = pneg %p190
        $region58: #{dqn_forward.1} parent=47 // pred_check_branch
          %2287 = sbr.rel (%p2285) target = $region60
        $region59: #{dqn_forward.1} parent=47 // pred_region
          %s2288 = smul.u32 16, %s20
        $region60: #{dqn_forward.1} parent=47 // pred_fallthru
          _
      $region48: #{dqn_forward.1} parent=5 // pred_fallthru
        _
      %p2289 = scmp.le.s32.totalorder 2, %s15
      // Predicated region
      $region61: #{dqn_forward.1} parent=5 // pred_check
        %p2290 = pneg %p2289
      $region62: #{dqn_forward.1} parent=5 // pred_check_branch
        %2292 = sbr.rel (%p2290) target = $region64
      $region63: #{dqn_forward.1} parent=5 // pred_region
        %s2293 = ssub.s32 %s15, 2
        // Predicated region
        $region65: #{dqn_forward.1} parent=63 // pred_check
          %p2294 = pneg %p196
        $region66: #{dqn_forward.1} parent=63 // pred_check_branch
          %2296 = sbr.rel (%p2294) target = $region68
        $region67: #{dqn_forward.1} parent=63 // pred_region
          %s2297 = smul.u32 16, %s21
          %p2298 = scmp.lt.s32.totalorder %s2297, 31
          %s2299 = scalar_select %p2298, %s2297, 31
          %s2300 = smul.addr %s2299, 8
          %s2301 = scalar_lea.vmem %s7, %s2300
        $region68: #{dqn_forward.1} parent=63 // pred_fallthru
          _
      $region64: #{dqn_forward.1} parent=5 // pred_fallthru
        _
    $region6: #{dqn_forward.1} parent=1 // loop_footer
      %s19 = sadd.s32 1, %s15
    $region7: #{dqn_forward.1} parent=1 // loop_footer_branch
      %14 = sbr.rel target = $region3
    $region8: #{dqn_forward.1} parent=1 // loop_exit
      _
    %2302 = vsyncpa [#allocation3], 1
    %s2303 = scalar_lea.sflag [#allocation3], 1
    %2304 = vsyncpa %s2303, 1
    %2305 = vsyncpa [#allocation5], 1

</llo_original>
